<compile_context>
chip_gen: v7x
topology: tpu7x:2x2x1
jax: 0.10.0
libtpu: 0.0.40
codegen_flags: <defaults>
</compile_context>

<pallas_src>
import functools

import jax
import jax.numpy as jnp
from jax.experimental import pallas as pl
from jax.experimental.pallas import tpu as pltpu


def _round_up(x, m):
    return ((x + m - 1) // m) * m


def fused_gcn_kernel(relu_flags, a_ref, x_ref, w_ref, b_ref, o_ref):
    """All GraphConv layers for one graph of the batch, fused on-chip.

    a_ref: [Np, Np]    bf16  normalized adjacency (zero padded)
    x_ref: [Np, Fp]    bf16  input node features (zero padded)
    w_ref: [L, Fp, Fp] bf16  stacked zero-padded layer weights (batch-shared)
    b_ref: [L, 1, Fp]  f32   stacked zero-padded biases        (batch-shared)
    o_ref: [Np, Fp]    bf16  last-layer output (lane dense)
    """
    n_layers = len(relu_flags)
    h = x_ref[...]                                    # bf16, resident across layers
    for l, apply_relu in enumerate(relu_flags):       # static unroll over layers
        # H @ W  (bf16 MXU inputs, f32 accumulation)
        xw = jnp.dot(h, w_ref[l], preferred_element_type=jnp.float32)
        # A_hat @ (H W); a_ref indexed inside the dot (not hoisted) so its live
        # range does not span the whole unrolled layer loop.
        axw = jnp.dot(a_ref[...], xw.astype(jnp.bfloat16),
                      preferred_element_type=jnp.float32)
        out = axw + b_ref[l]                          # f32 bias, broadcast over nodes
        if apply_relu:                                # static Python flag
            out = jnp.maximum(out, 0.0)
        if l + 1 < n_layers:
            h = out.astype(jnp.bfloat16)              # next-layer input, never leaves chip
        else:
            o_ref[...] = out.astype(o_ref.dtype)      # single bf16 lane-dense store


def gcn_forward(a_hat, features, params):
    """Fused GCN forward.

    a_hat:    [N, N] or [B, N, N]   symmetrically normalized adjacency
    features: [N, F] or [B, N, F]   node features
    params:   list of (W [Fi,Fo] f32, b [Fo] f32, apply_relu bool) per layer
    Returns f32 logits [N, C] (or [B, N, C]).
    """
    single = a_hat.ndim == 2
    if single:
        a_hat = a_hat[None]
        features = features[None]
    bsz, n, _ = a_hat.shape
    in_feats = features.shape[-1]
    n_classes = params[-1][0].shape[1]
    n_layers = len(params)

    feat_dims = [in_feats] + [w.shape[1] for (w, _, _) in params]
    f_pad = _round_up(max(feat_dims), 128)      # lane-dense feature width
    n_pad = _round_up(n, 128)                   # lane/sublane-dense node dim

    # --- VMEM budget: residency-sized limit + per-generation fused-path gate ---
    a_blk = n_pad * n_pad * 2                   # bf16 adjacency block
    x_blk = n_pad * f_pad * 2                   # bf16 feature block
    o_blk = n_pad * f_pad * 2                   # bf16 output block
    w_bytes = n_layers * f_pad * f_pad * 2
    b_bytes = n_layers * f_pad * 4
    # inputs/outputs are double-buffered by the pipeline; add room for the
    # f32 per-layer temporaries (xw / axw / out).
    resident = 2 * (a_blk + x_blk + o_blk + w_bytes + b_bytes) + 3 * n_pad * f_pad * 4
    try:
        phys_vmem = int(pltpu.get_tpu_info().vmem_capacity_bytes)
    except Exception:
        phys_vmem = 64 << 20                    # conservative: v7x per-TC VMEM
    if resident > int(0.85 * phys_vmem):
        # TODO(synk): per-layer row-tiled fallback (grid over row tiles of A,
        # reduction axis "arbitrary", f32 VMEM accumulator, 256-wide tiles on
        # v6e/v7x) for graphs whose dense A_hat no longer fits VMEM.
        raise NotImplementedError(
            f"fused GCN path needs ~{resident >> 20} MiB VMEM residency, "
            f"budget is {phys_vmem >> 20} MiB")
    vmem_limit = min(max(int(resident * 1.2), 32 << 20), phys_vmem - (4 << 20))

    # Zero-padded, bf16 MXU inputs (f32 biases for the f32 epilogue).
    a_p = jnp.zeros((bsz, n_pad, n_pad), jnp.bfloat16).at[:, :n, :n].set(
        a_hat.astype(jnp.bfloat16))
    x_p = jnp.zeros((bsz, n_pad, f_pad), jnp.bfloat16).at[:, :n, :in_feats].set(
        features.astype(jnp.bfloat16))
    w_stack = jnp.zeros((n_layers, f_pad, f_pad), jnp.bfloat16)
    b_stack = jnp.zeros((n_layers, 1, f_pad), jnp.float32)
    relu_flags = []
    for l, (w, b, act) in enumerate(params):
        fi, fo = w.shape
        w_stack = w_stack.at[l, :fi, :fo].set(w.astype(jnp.bfloat16))
        b_stack = b_stack.at[l, 0, :fo].set(b.astype(jnp.float32))
        relu_flags.append(bool(act))
    relu_flags = tuple(relu_flags)

    kernel = functools.partial(fused_gcn_kernel, relu_flags)

    flops = bsz * n_layers * (2 * n_pad * f_pad * f_pad + 2 * n_pad * n_pad * f_pad)
    bytes_accessed = (a_p.size * 2 + x_p.size * 2 + w_stack.size * 2
                      + b_stack.size * 4 + bsz * n_pad * f_pad * 2)
    cost = pl.CostEstimate(flops=flops, transcendentals=0,
                           bytes_accessed=bytes_accessed)

    out_p = pl.pallas_call(
        kernel,
        out_shape=jax.ShapeDtypeStruct((bsz, n_pad, f_pad), jnp.bfloat16),
        grid=(bsz,),
        in_specs=[
            pl.BlockSpec((None, n_pad, n_pad), lambda b: (b, 0, 0)),      # A_hat[b]
            pl.BlockSpec((None, n_pad, f_pad), lambda b: (b, 0, 0)),      # X[b]
            pl.BlockSpec((n_layers, f_pad, f_pad), lambda b: (0, 0, 0)),  # W stack (shared)
            pl.BlockSpec((n_layers, 1, f_pad), lambda b: (0, 0, 0)),      # bias stack (shared)
        ],
        out_specs=pl.BlockSpec((None, n_pad, f_pad), lambda b: (b, 0, 0)),
        compiler_params=pltpu.CompilerParams(
            dimension_semantics=("parallel",),      # batch axis -> megacore on v7x
            vmem_limit_bytes=vmem_limit),
        cost_estimate=cost,
    )(a_p, x_p, w_stack, b_stack)

    out = out_p[:, :n, :n_classes].astype(jnp.float32)
    return out[0] if single else out


def make_normalized_adjacency(key, n_nodes, edge_prob=0.3):
    """Random undirected graph with self loops, symmetric 'both' normalization."""
    upper = (jax.random.uniform(key, (n_nodes, n_nodes)) < edge_prob).astype(jnp.float32)
    upper = jnp.triu(upper, k=1)
    adj = upper + upper.T + jnp.eye(n_nodes, dtype=jnp.float32)  # add self loops
    deg = jnp.sum(adj, axis=1)
    d_inv_sqrt = 1.0 / jnp.sqrt(deg)
    return adj * d_inv_sqrt[:, None] * d_inv_sqrt[None, :]


def init_gcn_params(key, in_feats, n_hidden, n_classes, n_layers):
    """GCN.__init__: 1 input layer + (n_layers-1) hidden layers + 1 output layer."""
    dims = [(in_feats, n_hidden, True)]
    for _ in range(n_layers - 1):
        dims.append((n_hidden, n_hidden, True))
    dims.append((n_hidden, n_classes, False))  # last layer: no activation

    params = []
    for (fi, fo, act) in dims:
        key, wk = jax.random.split(key)
        # Xavier/Glorot uniform (DGL GraphConv default init), zero bias.
        limit = (6.0 / (fi + fo)) ** 0.5
        w = jax.random.uniform(wk, (fi, fo), jnp.float32, -limit, limit)
        b = jnp.zeros((fo,), jnp.float32)
        params.append((w, b, act))
    return params


def gcn_reference(a_hat, features, params):
    """Pure-JAX reference with the same bf16-input / f32-accumulate math."""
    a_bf = a_hat.astype(jnp.bfloat16)
    h = features.astype(jnp.bfloat16)
    out = None
    for (w, b, act) in params:
        xw = jnp.dot(h, w.astype(jnp.bfloat16), preferred_element_type=jnp.float32)
        axw = jnp.dot(a_bf, xw.astype(jnp.bfloat16), preferred_element_type=jnp.float32)
        out = axw + b[None, :]
        if act:
            out = jnp.maximum(out, 0.0)
        h = out.astype(jnp.bfloat16)
    # kernel stores the final layer in bf16 and the wrapper upcasts
    return out.astype(jnp.bfloat16).astype(jnp.float32)


if __name__ == "__main__":
    # Small shapes consistent with the module.
    N_NODES = 32
    IN_FEATS = 16
    N_HIDDEN = 32
    N_CLASSES = 8
    N_LAYERS = 2        # => 3 GraphConv layers total
    BATCH = 4           # several graphs in one pallas_call ("parallel" grid axis)
    DROPOUT = 0.5       # identity at inference

    root = jax.random.PRNGKey(0)
    k_graph, k_feat, k_param = jax.random.split(root, 3)

    graph_keys = jax.random.split(k_graph, BATCH)
    a_hat = jnp.stack([make_normalized_adjacency(k, N_NODES) for k in graph_keys])
    features = jax.random.normal(k_feat, (BATCH, N_NODES, IN_FEATS), jnp.float32)
    params = init_gcn_params(k_param, IN_FEATS, N_HIDDEN, N_CLASSES, N_LAYERS)

    # Batched path: one pallas_call, grid over the batch.
    out = gcn_forward(a_hat, features, params)
    out = jax.block_until_ready(out)
    assert out.shape == (BATCH, N_NODES, N_CLASSES), out.shape
    assert out.dtype == jnp.float32

    # Single-graph path (original module semantics, B=1).
    out_single = gcn_forward(a_hat[0], features[0], params)
    out_single = jax.block_until_ready(out_single)
    assert out_single.shape == (N_NODES, N_CLASSES), out_single.shape
    assert out_single.dtype == jnp.float32

    # Verify against the pure-JAX reference per graph.
    for b in range(BATCH):
        ref = gcn_reference(a_hat[b], features[b], params)
        assert jnp.allclose(out[b], ref, atol=2e-2, rtol=2e-2), f"graph {b} mismatch"
    assert jnp.allclose(out_single, out[0], atol=2e-2, rtol=2e-2)

    print("KERNEL_OK")
</pallas_src>

<mosaic_0001>
module attributes {stable_mosaic.version = 11 : i64} {
  func.func @fused_gcn_kernel(%arg0: i32, %arg1: memref<1x128x128xbf16, #tpu.memory_space<vmem>>, %arg2: memref<1x128x128xbf16, #tpu.memory_space<vmem>>, %arg3: memref<3x128x128xbf16, #tpu.memory_space<vmem>>, %arg4: memref<3x1x128xf32, #tpu.memory_space<vmem>>, %arg5: memref<1x128x128xbf16, #tpu.memory_space<vmem>>) attributes {dimension_semantics = [#tpu.dimension_semantics<parallel>], iteration_bounds = array<i64: 4>, scalar_prefetch = 0 : i64, scratch_operands = 0 : i64, tpu.core_type = #tpu.core_type<tc>, window_params = [{transform_indices = @transform_0, window_bounds = array<i64: 1, 128, 128>}, {transform_indices = @transform_1, window_bounds = array<i64: 1, 128, 128>}, {pipeline_mode = #tpu.pipeline_mode<synchronous>, transform_indices = @transform_2, window_bounds = array<i64: 3, 128, 128>}, {pipeline_mode = #tpu.pipeline_mode<synchronous>, transform_indices = @transform_3, window_bounds = array<i64: 3, 1, 128>}, {transform_indices = @transform_4, window_bounds = array<i64: 1, 128, 128>}]} {
    %c0 = arith.constant 0 : index
    %c0_0 = arith.constant 0 : index
    %c0_1 = arith.constant 0 : index
    %0 = vector.load %arg2[%c0, %c0_0, %c0_1] : memref<1x128x128xbf16, #tpu.memory_space<vmem>>, vector<1x128x128xbf16>
    %1 = vector.shape_cast %0 : vector<1x128x128xbf16> to vector<128x128xbf16>
    %c0_2 = arith.constant 0 : index
    %c0_3 = arith.constant 0 : index
    %c0_4 = arith.constant 0 : index
    %2 = vector.load %arg3[%c0_2, %c0_3, %c0_4] : memref<3x128x128xbf16, #tpu.memory_space<vmem>>, vector<1x128x128xbf16>
    %3 = vector.shape_cast %2 : vector<1x128x128xbf16> to vector<128x128xbf16>
    %cst = arith.constant dense<0.000000e+00> : vector<128x128xf32>
    %4 = tpu.matmul %1, %3, %cst {dimension_numbers = #tpu.dot_dimension_numbers<[1], [0], [0], [1], [0, 0, 1, 1], [], []>} : vector<128x128xbf16>, vector<128x128xbf16>, vector<128x128xf32> -> vector<128x128xf32>
    %c0_5 = arith.constant 0 : index
    %c0_6 = arith.constant 0 : index
    %c0_7 = arith.constant 0 : index
    %5 = vector.load %arg1[%c0_5, %c0_6, %c0_7] : memref<1x128x128xbf16, #tpu.memory_space<vmem>>, vector<1x128x128xbf16>
    %6 = vector.shape_cast %5 : vector<1x128x128xbf16> to vector<128x128xbf16>
    %7 = arith.truncf %4 : vector<128x128xf32> to vector<128x128xbf16>
    %cst_8 = arith.constant dense<0.000000e+00> : vector<128x128xf32>
    %8 = tpu.matmul %6, %7, %cst_8 {dimension_numbers = #tpu.dot_dimension_numbers<[1], [0], [0], [1], [0, 0, 1, 1], [], []>} : vector<128x128xbf16>, vector<128x128xbf16>, vector<128x128xf32> -> vector<128x128xf32>
    %c0_9 = arith.constant 0 : index
    %c0_10 = arith.constant 0 : index
    %c0_11 = arith.constant 0 : index
    %9 = vector.load %arg4[%c0_9, %c0_10, %c0_11] : memref<3x1x128xf32, #tpu.memory_space<vmem>>, vector<1x1x128xf32>
    %10 = vector.shape_cast %9 : vector<1x1x128xf32> to vector<1x128xf32>
    %11 = vector.broadcast %10 : vector<1x128xf32> to vector<128x128xf32>
    %12 = arith.addf %8, %11 : vector<128x128xf32>
    %cst_12 = arith.constant 0.000000e+00 : f32
    %13 = vector.broadcast %cst_12 : f32 to vector<128x128xf32>
    %14 = arith.maximumf %12, %13 : vector<128x128xf32>
    %15 = arith.truncf %14 : vector<128x128xf32> to vector<128x128xbf16>
    %c1 = arith.constant 1 : index
    %c0_13 = arith.constant 0 : index
    %c0_14 = arith.constant 0 : index
    %16 = vector.load %arg3[%c1, %c0_13, %c0_14] : memref<3x128x128xbf16, #tpu.memory_space<vmem>>, vector<1x128x128xbf16>
    %17 = vector.shape_cast %16 : vector<1x128x128xbf16> to vector<128x128xbf16>
    %cst_15 = arith.constant dense<0.000000e+00> : vector<128x128xf32>
    %18 = tpu.matmul %15, %17, %cst_15 {dimension_numbers = #tpu.dot_dimension_numbers<[1], [0], [0], [1], [0, 0, 1, 1], [], []>} : vector<128x128xbf16>, vector<128x128xbf16>, vector<128x128xf32> -> vector<128x128xf32>
    %c0_16 = arith.constant 0 : index
    %c0_17 = arith.constant 0 : index
    %c0_18 = arith.constant 0 : index
    %19 = vector.load %arg1[%c0_16, %c0_17, %c0_18] : memref<1x128x128xbf16, #tpu.memory_space<vmem>>, vector<1x128x128xbf16>
    %20 = vector.shape_cast %19 : vector<1x128x128xbf16> to vector<128x128xbf16>
    %21 = arith.truncf %18 : vector<128x128xf32> to vector<128x128xbf16>
    %cst_19 = arith.constant dense<0.000000e+00> : vector<128x128xf32>
    %22 = tpu.matmul %20, %21, %cst_19 {dimension_numbers = #tpu.dot_dimension_numbers<[1], [0], [0], [1], [0, 0, 1, 1], [], []>} : vector<128x128xbf16>, vector<128x128xbf16>, vector<128x128xf32> -> vector<128x128xf32>
    %c1_20 = arith.constant 1 : index
    %c0_21 = arith.constant 0 : index
    %c0_22 = arith.constant 0 : index
    %23 = vector.load %arg4[%c1_20, %c0_21, %c0_22] : memref<3x1x128xf32, #tpu.memory_space<vmem>>, vector<1x1x128xf32>
    %24 = vector.shape_cast %23 : vector<1x1x128xf32> to vector<1x128xf32>
    %25 = vector.broadcast %24 : vector<1x128xf32> to vector<128x128xf32>
    %26 = arith.addf %22, %25 : vector<128x128xf32>
    %cst_23 = arith.constant 0.000000e+00 : f32
    %27 = vector.broadcast %cst_23 : f32 to vector<128x128xf32>
    %28 = arith.maximumf %26, %27 : vector<128x128xf32>
    %29 = arith.truncf %28 : vector<128x128xf32> to vector<128x128xbf16>
    %c2 = arith.constant 2 : index
    %c0_24 = arith.constant 0 : index
    %c0_25 = arith.constant 0 : index
    %30 = vector.load %arg3[%c2, %c0_24, %c0_25] : memref<3x128x128xbf16, #tpu.memory_space<vmem>>, vector<1x128x128xbf16>
    %31 = vector.shape_cast %30 : vector<1x128x128xbf16> to vector<128x128xbf16>
    %cst_26 = arith.constant dense<0.000000e+00> : vector<128x128xf32>
    %32 = tpu.matmul %29, %31, %cst_26 {dimension_numbers = #tpu.dot_dimension_numbers<[1], [0], [0], [1], [0, 0, 1, 1], [], []>} : vector<128x128xbf16>, vector<128x128xbf16>, vector<128x128xf32> -> vector<128x128xf32>
    %c0_27 = arith.constant 0 : index
    %c0_28 = arith.constant 0 : index
    %c0_29 = arith.constant 0 : index
    %33 = vector.load %arg1[%c0_27, %c0_28, %c0_29] : memref<1x128x128xbf16, #tpu.memory_space<vmem>>, vector<1x128x128xbf16>
    %34 = vector.shape_cast %33 : vector<1x128x128xbf16> to vector<128x128xbf16>
    %35 = arith.truncf %32 : vector<128x128xf32> to vector<128x128xbf16>
    %cst_30 = arith.constant dense<0.000000e+00> : vector<128x128xf32>
    %36 = tpu.matmul %34, %35, %cst_30 {dimension_numbers = #tpu.dot_dimension_numbers<[1], [0], [0], [1], [0, 0, 1, 1], [], []>} : vector<128x128xbf16>, vector<128x128xbf16>, vector<128x128xf32> -> vector<128x128xf32>
    %c2_31 = arith.constant 2 : index
    %c0_32 = arith.constant 0 : index
    %c0_33 = arith.constant 0 : index
    %37 = vector.load %arg4[%c2_31, %c0_32, %c0_33] : memref<3x1x128xf32, #tpu.memory_space<vmem>>, vector<1x1x128xf32>
    %38 = vector.shape_cast %37 : vector<1x1x128xf32> to vector<1x128xf32>
    %39 = vector.broadcast %38 : vector<1x128xf32> to vector<128x128xf32>
    %40 = arith.addf %36, %39 : vector<128x128xf32>
    %41 = arith.truncf %40 : vector<128x128xf32> to vector<128x128xbf16>
    %c0_34 = arith.constant 0 : index
    %c0_35 = arith.constant 0 : index
    %c0_36 = arith.constant 0 : index
    %42 = vector.load %arg5[%c0_34, %c0_35, %c0_36] : memref<1x128x128xbf16, #tpu.memory_space<vmem>>, vector<1x128x128xbf16>
    %43 = vector.shape_cast %42 : vector<1x128x128xbf16> to vector<128x128xbf16>
    %44 = vector.shape_cast %41 : vector<128x128xbf16> to vector<1x128x128xbf16>
    tpu.vector_store %arg5[%c0_34, %c0_35, %c0_36], %44 {strides = array<i32>} : memref<1x128x128xbf16, #tpu.memory_space<vmem>>, vector<1x128x128xbf16>,
    return
  }
  func.func @transform_0(%arg0: i32) -> (i32, i32, i32) {
    %c0_i32 = arith.constant 0 : i32
    %c0_i32_0 = arith.constant 0 : i32
    %c0_i32_1 = arith.constant 0 : i32
    return %arg0, %c0_i32, %c0_i32_0 : i32, i32, i32
  }
  func.func @transform_1(%arg0: i32) -> (i32, i32, i32) {
    %c0_i32 = arith.constant 0 : i32
    %c0_i32_0 = arith.constant 0 : i32
    %c0_i32_1 = arith.constant 0 : i32
    return %arg0, %c0_i32, %c0_i32_0 : i32, i32, i32
  }
  func.func @transform_2(%arg0: i32) -> (i32, i32, i32) {
    %c0_i32 = arith.constant 0 : i32
    %c0_i32_0 = arith.constant 0 : i32
    %c0_i32_1 = arith.constant 0 : i32
    %c0_i32_2 = arith.constant 0 : i32
    return %c0_i32, %c0_i32_0, %c0_i32_1 : i32, i32, i32
  }
  func.func @transform_3(%arg0: i32) -> (i32, i32, i32) {
    %c0_i32 = arith.constant 0 : i32
    %c0_i32_0 = arith.constant 0 : i32
    %c0_i32_1 = arith.constant 0 : i32
    %c0_i32_2 = arith.constant 0 : i32
    return %c0_i32, %c0_i32_0, %c0_i32_1 : i32, i32, i32
  }
  func.func @transform_4(%arg0: i32) -> (i32, i32, i32) {
    %c0_i32 = arith.constant 0 : i32
    %c0_i32_0 = arith.constant 0 : i32
    %c0_i32_1 = arith.constant 0 : i32
    return %arg0, %c0_i32, %c0_i32_0 : i32, i32, i32
  }
}

</mosaic_0001>

<llo_original>
// kernel: tpu_custom_call.1
$region0: #{tpu_custom_call.1}
  #allocation0 [shape = 'u32[]', space=smem, size = 0x4, offset = 0x4, fixed_abs, tag = 'smem constant byte address 0x4 - core index']
  #allocation1 [shape = 'u32[144,128]{1,0:T(1,128)}', space=vmem, size = 0x12000, scoped, tag = 'internal scratch']
  %s0 = inlined_call_operand.hbm [shape: bf16[4,128,128], index: 0, kind: input, shape index: {}]
  %s1 = inlined_call_operand.hbm [shape: bf16[4,128,128], index: 1, kind: input, shape index: {}]
  %s2 = inlined_call_operand.hbm [shape: bf16[3,128,128], index: 2, kind: input, shape index: {}]
  %s3 = inlined_call_operand.vmem [shape: f32[3,1,128], index: 3, kind: input, shape index: {}]
  %s4 = inlined_call_operand.hbm [shape: bf16[4,128,128], index: 4, kind: output, shape index: {}]
  %s5 = sld [smem:[#allocation0]]
  $region61: #{tpu_custom_call.1} parent=0
    _
  %s7 = ssub.s32 1, %s5
  %s8 = scalar_select 0, %s7, %s5
  $region1: #{tpu_custom_call.1} parent=0
    #allocation2 [shape = 'u8[65536]{0}', space=vmem, size = 0x10000, scoped, tag = 'input window, operand 0']
    #allocation3 [shape = 's32[2]{0}', space=sflag, size = 0x8, scoped, tag = 'scoped memory for tpu_custom_call.1']
    #allocation4 [shape = 's32[2]{0}', space=sflag, size = 0x8, scoped, tag = 'scoped memory for tpu_custom_call.1']
    #allocation5 [shape = 'u8[65536]{0}', space=vmem, size = 0x10000, scoped, tag = 'input window, operand 1']
    #allocation6 [shape = 's32[2]{0}', space=sflag, size = 0x8, scoped, tag = 'scoped memory for tpu_custom_call.1']
    #allocation7 [shape = 'u8[98304]{0}', space=vmem, size = 0x18000, scoped, tag = 'input window, operand 2, single buffered']
    #allocation8 [shape = 'u8[65536]{0}', space=vmem, size = 0x10000, scoped, tag = 'output window, operand 0']
    %9 = vsyncpa [#allocation3], 0
    %s10 = scalar_lea.sflag [#allocation3], 1
    %11 = vsyncpa %s10, 0
    %12 = vsyncpa [#allocation6], 0
    %s13 = scalar_lea.sflag [#allocation6], 1
    %14 = vsyncpa %s13, 0
    %15 = vsyncpa [#allocation4], 0
    %s16 = scalar_lea.sflag [#allocation4], 1
    %17 = vsyncpa %s16, 0
    loop: start=0, step=1, limit=6
    $region2: #{tpu_custom_call.1} parent=1 // loop_pre_header
      _
    $region3: #{tpu_custom_call.1} parent=1 // loop_header
      %s19 = sphi 0, %s23
      %p20 = scmp.ge.s32.totalorder %s19, 6
      %s29 = sphi 0, %s31
      %s32 = sphi 0, %s29
      %s33 = sphi 0, %s32
      %s49 = sphi 0, %s33
      %s55 = sphi 0, %s57
      %s58 = sphi 0, %s55
      %s59 = sphi 0, %s58
      %s75 = sphi 0, %s59
      %s79 = sphi 0, %s79
      %s81 = sphi 0, %s79
      %s82 = sphi 0, %s81
      %s96 = sphi 0, %s82
      %s100 = sphi 0, %s100
      %s102 = sphi 0, %s100
      %s103 = sphi 0, %s102
      %s117 = sphi 0, %s103
      %s123 = sphi 0, %s125
      %s126 = sphi 0, %s123
      %s127 = sphi 0, %s126
      %s143 = sphi 0, %s127
    $region4: #{tpu_custom_call.1} parent=1 // loop_header_branch
      %22 = sbr.rel (%p20) target = $region8
    $region5: #{tpu_custom_call.1} parent=1 // loop_body
      %s24 = ssub.s32 %s19, 1
      %s25 = ssub.s32 %s19, 2
      %s26 = sadd.s32 %s19, 1
      %s27 = ssub.s32 %s19, %s26
      %p28 = scmp.eq.s32.totalorder %s27, 0
      %s30 = sadd.s32 %s29, 1
      %s31 = scalar_select %p28, %s29, %s30
      %p34 = pneg %p28
      %p35 = scmp.eq.s32.totalorder %s19, 3
      %p36 = por %p34, %p35
      %p37 = scmp.ne.s32.totalorder %s29, %s32
      %p38 = scmp.eq.s32.totalorder %s19, 0
      %p39 = por %p37, %p38
      %p40 = scmp.ne.s32.totalorder %s29, %s32
      %p41 = scmp.eq.s32.totalorder %s24, 3
      %p42 = por %p40, %p41
      %p43 = scmp.ne.s32.totalorder %s32, %s33
      %p44 = scmp.eq.s32.totalorder %s24, 0
      %p45 = por %p43, %p44
      %p46 = scmp.ne.s32.totalorder %s32, %s33
      %p47 = scmp.eq.s32.totalorder %s25, 3
      %p48 = por %p46, %p47
      %p50 = scmp.ne.s32.totalorder %s33, %s49
      %p51 = scmp.eq.s32.totalorder %s25, 0
      %p52 = por %p50, %p51
      %s53 = ssub.s32 %s19, %s26
      %p54 = scmp.eq.s32.totalorder %s53, 0
      %s56 = sadd.s32 %s55, 1
      %s57 = scalar_select %p54, %s55, %s56
      %p60 = pneg %p54
      %p61 = scmp.eq.s32.totalorder %s19, 3
      %p62 = por %p60, %p61
      %p63 = scmp.ne.s32.totalorder %s55, %s58
      %p64 = scmp.eq.s32.totalorder %s19, 0
      %p65 = por %p63, %p64
      %p66 = scmp.ne.s32.totalorder %s55, %s58
      %p67 = scmp.eq.s32.totalorder %s24, 3
      %p68 = por %p66, %p67
      %p69 = scmp.ne.s32.totalorder %s58, %s59
      %p70 = scmp.eq.s32.totalorder %s24, 0
      %p71 = por %p69, %p70
      %p72 = scmp.ne.s32.totalorder %s58, %s59
      %p73 = scmp.eq.s32.totalorder %s25, 3
      %p74 = por %p72, %p73
      %p76 = scmp.ne.s32.totalorder %s59, %s75
      %p77 = scmp.eq.s32.totalorder %s25, 0
      %p78 = por %p76, %p77
      %s80 = sadd.s32 %s79, 1
      %p83 = scmp.eq.s32.totalorder %s19, 3
      %p84 = scmp.ne.s32.totalorder %s79, %s81
      %p85 = scmp.eq.s32.totalorder %s19, 0
      %p86 = por %p84, %p85
      %p87 = scmp.ne.s32.totalorder %s79, %s81
      %p88 = scmp.eq.s32.totalorder %s24, 3
      %p89 = por %p87, %p88
      %p90 = scmp.ne.s32.totalorder %s81, %s82
      %p91 = scmp.eq.s32.totalorder %s24, 0
      %p92 = por %p90, %p91
      %p93 = scmp.ne.s32.totalorder %s81, %s82
      %p94 = scmp.eq.s32.totalorder %s25, 3
      %p95 = por %p93, %p94
      %p97 = scmp.ne.s32.totalorder %s82, %s96
      %p98 = scmp.eq.s32.totalorder %s25, 0
      %p99 = por %p97, %p98
      %s101 = sadd.s32 %s100, 1
      %p104 = scmp.eq.s32.totalorder %s19, 3
      %p105 = scmp.ne.s32.totalorder %s100, %s102
      %p106 = scmp.eq.s32.totalorder %s19, 0
      %p107 = por %p105, %p106
      %p108 = scmp.ne.s32.totalorder %s100, %s102
      %p109 = scmp.eq.s32.totalorder %s24, 3
      %p110 = por %p108, %p109
      %p111 = scmp.ne.s32.totalorder %s102, %s103
      %p112 = scmp.eq.s32.totalorder %s24, 0
      %p113 = por %p111, %p112
      %p114 = scmp.ne.s32.totalorder %s102, %s103
      %p115 = scmp.eq.s32.totalorder %s25, 3
      %p116 = por %p114, %p115
      %p118 = scmp.ne.s32.totalorder %s103, %s117
      %p119 = scmp.eq.s32.totalorder %s25, 0
      %p120 = por %p118, %p119
      %s121 = ssub.s32 %s19, %s26
      %p122 = scmp.eq.s32.totalorder %s121, 0
      %s124 = sadd.s32 %s123, 1
      %s125 = scalar_select %p122, %s123, %s124
      %p128 = pneg %p122
      %p129 = scmp.eq.s32.totalorder %s19, 3
      %p130 = por %p128, %p129
      %p131 = scmp.ne.s32.totalorder %s123, %s126
      %p132 = scmp.eq.s32.totalorder %s19, 0
      %p133 = por %p131, %p132
      %p134 = scmp.ne.s32.totalorder %s123, %s126
      %p135 = scmp.eq.s32.totalorder %s24, 3
      %p136 = por %p134, %p135
      %p137 = scmp.ne.s32.totalorder %s126, %s127
      %p138 = scmp.eq.s32.totalorder %s24, 0
      %p139 = por %p137, %p138
      %p140 = scmp.ne.s32.totalorder %s126, %s127
      %p141 = scmp.eq.s32.totalorder %s25, 3
      %p142 = por %p140, %p141
      %p144 = scmp.ne.s32.totalorder %s127, %s143
      %p145 = scmp.eq.s32.totalorder %s25, 0
      %p146 = por %p144, %p145
      %p147 = scmp.le.s32.totalorder 1, %s19
      %p148 = scmp.lt.s32.totalorder %s19, 5
      %p149 = pnand %p147, %p148
      %p150 = pneg %p149
      // Predicated region
      $region9: #{tpu_custom_call.1} parent=5 // pred_check
        _
      $region10: #{tpu_custom_call.1} parent=5 // pred_check_branch
        %152 = sbr.rel (%p149) target = $region12
      $region11: #{tpu_custom_call.1} parent=5 // pred_region
        %s153 = ssub.s32 %s19, 1
        // Predicated region
        $region13: #{tpu_custom_call.1} parent=11 // pred_check
          %p154 = pneg %p92
        $region14: #{tpu_custom_call.1} parent=11 // pred_check_branch
          %156 = sbr.rel (%p154) target = $region16
        $region15: #{tpu_custom_call.1} parent=11 // pred_region
          %s158 = ssub.s32 3072, 3072
          %159 = vsyncadd [#allocation6], %s158
          %s160 = sshll.u32 [#allocation7], 4
          %s161 = int_to_ptr.vmem [resolvable:$true] %s160
          %166 = dma.hbm_to_vmem [thread:$0]  %s2, 3072, %s161, [#allocation6], 64, 64, 4
        $region16: #{tpu_custom_call.1} parent=11 // pred_fallthru
          _
        // Predicated region
        $region17: #{tpu_custom_call.1} parent=11 // pred_check
          %p167 = pneg %p113
        $region18: #{tpu_custom_call.1} parent=11 // pred_check_branch
          %169 = sbr.rel (%p167) target = $region20
        $region19: #{tpu_custom_call.1} parent=11 // pred_region
          _
        $region20: #{tpu_custom_call.1} parent=11 // pred_fallthru
          _
      $region12: #{tpu_custom_call.1} parent=5 // pred_fallthru
        _
      %p170 = scmp.lt.s32.totalorder %s19, 4
      // Predicated region
      $region21: #{tpu_custom_call.1} parent=5 // pred_check
        %p171 = pneg %p170
      $region22: #{tpu_custom_call.1} parent=5 // pred_check_branch
        %173 = sbr.rel (%p171) target = $region24
      $region23: #{tpu_custom_call.1} parent=5 // pred_region
        // Predicated region
        $region25: #{tpu_custom_call.1} parent=23 // pred_check
          %p174 = pneg %p39
        $region26: #{tpu_custom_call.1} parent=23 // pred_check_branch
          %176 = sbr.rel (%p174) target = $region28
        $region27: #{tpu_custom_call.1} parent=23 // pred_region
          %s177 = sand.u32 %s29, 1
          %s178 = scalar_lea.sflag [#allocation3], %s177
          %s179 = sand.u32 %s29, 1
          %s180 = smul.addr %s179, 64
          %s181 = scalar_lea.vmem [#allocation2], %s180
          %s183 = ssub.s32 1024, 1024
          %184 = vsyncadd %s178, %s183
          %s185 = smul.addr %s19, 16
          %s186 = smul.addr %s185, 64
          %s187 = scalar_lea.hbm %s0, %s186
          %s188 = sshll.u32 %s181, 4
          %s189 = int_to_ptr.vmem [resolvable:$true] %s188
          %194 = dma.hbm_to_vmem [thread:$0]  %s187, 1024, %s189, %s178, 64, 64, 4
        $region28: #{tpu_custom_call.1} parent=23 // pred_fallthru
          _
        // Predicated region
        $region29: #{tpu_custom_call.1} parent=23 // pred_check
          %p195 = pneg %p65
        $region30: #{tpu_custom_call.1} parent=23 // pred_check_branch
          %197 = sbr.rel (%p195) target = $region32
        $region31: #{tpu_custom_call.1} parent=23 // pred_region
          %s198 = sand.u32 %s19, 1
          %s199 = scalar_lea.sflag [#allocation6], %s198
          %s200 = sand.u32 %s55, 1
          %s201 = smul.addr %s200, 64
          %s202 = scalar_lea.vmem [#allocation5], %s201
          %s204 = ssub.s32 1024, 1024
          %205 = vsyncadd %s199, %s204
          %s206 = smul.addr %s19, 16
          %s207 = smul.addr %s206, 64
          %s208 = scalar_lea.hbm %s1, %s207
          %s209 = sshll.u32 %s202, 4
          %s210 = int_to_ptr.vmem [resolvable:$true] %s209
          %215 = dma.hbm_to_vmem [thread:$0]  %s208, 1024, %s210, %s199, 64, 64, 4
        $region32: #{tpu_custom_call.1} parent=23 // pred_fallthru
          _
      $region24: #{tpu_custom_call.1} parent=5 // pred_fallthru
        _
      %p216 = scmp.le.s32.totalorder 1, %s19
      %p217 = scmp.lt.s32.totalorder %s19, 5
      %p218 = pnand %p216, %p217
      %p219 = pneg %p218
      // Predicated region
      $region33: #{tpu_custom_call.1} parent=5 // pred_check
        _
      $region34: #{tpu_custom_call.1} parent=5 // pred_check_branch
        %221 = sbr.rel (%p218) target = $region36
      $region35: #{tpu_custom_call.1} parent=5 // pred_region
        %s222 = ssub.s32 %s19, 1
        %s223 = sand.u32 %s32, 1
        %s224 = scalar_lea.sflag [#allocation3], %s223
        %s225 = sand.u32 %s32, 1
        %s226 = smul.addr %s225, 64
        %s227 = scalar_lea.vmem [#allocation2], %s226
        // Predicated region
        $region37: #{tpu_custom_call.1} parent=35 // pred_check
          %p228 = pneg %p45
        $region38: #{tpu_custom_call.1} parent=35 // pred_check_branch
          %230 = sbr.rel (%p228) target = $region40
        $region39: #{tpu_custom_call.1} parent=35 // pred_region
          %231 = dma.done %s224, 1024
        $region40: #{tpu_custom_call.1} parent=35 // pred_fallthru
          _
        %s232 = sand.u32 %s24, 1
        %s233 = scalar_lea.sflag [#allocation6], %s232
        %s234 = sand.u32 %s58, 1
        %s235 = smul.addr %s234, 64
        %s236 = scalar_lea.vmem [#allocation5], %s235
        // Predicated region
        $region41: #{tpu_custom_call.1} parent=35 // pred_check
          %p237 = pneg %p71
        $region42: #{tpu_custom_call.1} parent=35 // pred_check_branch
          %239 = sbr.rel (%p237) target = $region44
        $region43: #{tpu_custom_call.1} parent=35 // pred_region
          %240 = dma.done %s233, 1024
        $region44: #{tpu_custom_call.1} parent=35 // pred_fallthru
          _
        // Predicated region
        $region45: #{tpu_custom_call.1} parent=35 // pred_check
          %p241 = pneg %p92
        $region46: #{tpu_custom_call.1} parent=35 // pred_check_branch
          %243 = sbr.rel (%p241) target = $region48
        $region47: #{tpu_custom_call.1} parent=35 // pred_region
          %244 = dma.done [#allocation6], 3072
        $region48: #{tpu_custom_call.1} parent=35 // pred_fallthru
          _
        %s245 = sand.u32 %s32, 1
        %s246 = scalar_lea.sflag [#allocation3], %s245
        %s247 = sand.u32 %s32, 1
        %s248 = smul.addr %s247, 64
        %s249 = scalar_lea.vmem [#allocation2], %s248
        %p250 = pneg %p45
        %p251 = pneg %p42
        %s252 = sand.u32 %s24, 1
        %s253 = scalar_lea.sflag [#allocation6], %s252
        %s254 = sand.u32 %s58, 1
        %s255 = smul.addr %s254, 64
        %s256 = scalar_lea.vmem [#allocation5], %s255
        %p257 = pneg %p71
        %p258 = pneg %p68
        %p259 = pneg %p92
        %p260 = pneg %p89
        %p261 = pneg %p113
        %p262 = pneg %p110
        %p263 = pneg %p139
        %p264 = pneg %p136
        %s265 = sand.u32 %s126, 1
        %s266 = scalar_lea.sflag [#allocation4], %s265
        %s267 = sand.u32 %s126, 1
        %s268 = smul.addr %s267, 64
        %s269 = scalar_lea.vmem [#allocation8], %s268
        %v271 = vld [vmem:[%s236] sm:$0xf]
        %v272 = vld [vmem:[%s236 + $0x4] sm:$0xf]
        %v273 = vld [vmem:[%s236 + $0x8] sm:$0xf]
        %v274 = vld [vmem:[%s236 + $0xc] sm:$0xf]
        %v275 = vld [vmem:[%s236 + $0x10] sm:$0xf]
        %v276 = vld [vmem:[%s236 + $0x14] sm:$0xf]
        %v277 = vld [vmem:[%s236 + $0x18] sm:$0xf]
        %v278 = vld [vmem:[%s236 + $0x1c] sm:$0xf]
        %v279 = vld [vmem:[%s236 + $0x20] sm:$0xf]
        %v280 = vld [vmem:[%s236 + $0x24] sm:$0xf]
        %v281 = vld [vmem:[%s236 + $0x28] sm:$0xf]
        %v282 = vld [vmem:[%s236 + $0x2c] sm:$0xf]
        %v283 = vld [vmem:[%s236 + $0x30] sm:$0xf]
        %v284 = vld [vmem:[%s236 + $0x34] sm:$0xf]
        %v285 = vld [vmem:[%s236 + $0x38] sm:$0xf]
        %v286 = vld [vmem:[%s236 + $0x3c] sm:$0xf]
        %v287 = vld [vmem:[#allocation7] sm:$0xf]
        %v288 = vld [vmem:[#allocation7 + $0x4] sm:$0xf]
        %v289 = vld [vmem:[#allocation7 + $0x8] sm:$0xf]
        %v290 = vld [vmem:[#allocation7 + $0xc] sm:$0xf]
        %v291 = vld [vmem:[#allocation7 + $0x10] sm:$0xf]
        %v292 = vld [vmem:[#allocation7 + $0x14] sm:$0xf]
        %v293 = vld [vmem:[#allocation7 + $0x18] sm:$0xf]
        %v294 = vld [vmem:[#allocation7 + $0x1c] sm:$0xf]
        %v295 = vld [vmem:[#allocation7 + $0x20] sm:$0xf]
        %v296 = vld [vmem:[#allocation7 + $0x24] sm:$0xf]
        %v297 = vld [vmem:[#allocation7 + $0x28] sm:$0xf]
        %v298 = vld [vmem:[#allocation7 + $0x2c] sm:$0xf]
        %v299 = vld [vmem:[#allocation7 + $0x30] sm:$0xf]
        %v300 = vld [vmem:[#allocation7 + $0x34] sm:$0xf]
        %v301 = vld [vmem:[#allocation7 + $0x38] sm:$0xf]
        %v302 = vld [vmem:[#allocation7 + $0x3c] sm:$0xf]
        %v319 = vunpack.c.l.b16 %v271
        %v320 = vunpack.c.l.b16 %v272
        %v321 = vunpack.c.l.b16 %v273
        %v322 = vunpack.c.l.b16 %v274
        %v323 = vunpack.c.l.b16 %v275
        %v324 = vunpack.c.l.b16 %v276
        %v325 = vunpack.c.l.b16 %v277
        %v326 = vunpack.c.l.b16 %v278
        %v327 = vunpack.c.l.b16 %v279
        %v328 = vunpack.c.l.b16 %v280
        %v329 = vunpack.c.l.b16 %v281
        %v330 = vunpack.c.l.b16 %v282
        %v331 = vunpack.c.l.b16 %v283
        %v332 = vunpack.c.l.b16 %v284
        %v333 = vunpack.c.l.b16 %v285
        %v334 = vunpack.c.l.b16 %v286
        %v335 = vpack.c.b16 %v320, %v319
        %v336 = vpack.c.b16 %v322, %v321
        %v337 = vpack.c.b16 %v324, %v323
        %v338 = vpack.c.b16 %v326, %v325
        %v339 = vpack.c.b16 %v328, %v327
        %v340 = vpack.c.b16 %v330, %v329
        %v341 = vpack.c.b16 %v332, %v331
        %v342 = vpack.c.b16 %v334, %v333
        %v367 = vunpack.c.l.b16 %v287
        %v368 = vunpack.c.l.b16 %v288
        %v369 = vunpack.c.l.b16 %v289
        %v370 = vunpack.c.l.b16 %v290
        %v371 = vunpack.c.l.b16 %v291
        %v372 = vunpack.c.l.b16 %v292
        %v373 = vunpack.c.l.b16 %v293
        %v374 = vunpack.c.l.b16 %v294
        %v375 = vunpack.c.l.b16 %v295
        %v376 = vunpack.c.l.b16 %v296
        %v377 = vunpack.c.l.b16 %v297
        %v378 = vunpack.c.l.b16 %v298
        %v379 = vunpack.c.l.b16 %v299
        %v380 = vunpack.c.l.b16 %v300
        %v381 = vunpack.c.l.b16 %v301
        %v382 = vunpack.c.l.b16 %v302
        %v383 = vpack.c.b16 %v368, %v367
        %v384 = vpack.c.b16 %v370, %v369
        %v385 = vpack.c.b16 %v372, %v371
        %v386 = vpack.c.b16 %v374, %v373
        %v387 = vpack.c.b16 %v376, %v375
        %v388 = vpack.c.b16 %v378, %v377
        %v389 = vpack.c.b16 %v380, %v379
        %v390 = vpack.c.b16 %v382, %v381
        %399 = vmatprep.subr.bf16.mxu0 0
        %400 = vmatpush1.bf16.msra.mxu0 %v383
        %401 = vmatprep.subr.bf16.mxu0 0
        %402 = vmatpush1.bf16.msra.mxu0 %v384
        %403 = vmatprep.subr.bf16.mxu0 0
        %404 = vmatpush1.bf16.msra.mxu0 %v385
        %405 = vmatprep.subr.bf16.mxu0 0
        %406 = vmatpush1.bf16.msra.mxu0 %v386
        %407 = vmatprep.subr.bf16.mxu0 0
        %408 = vmatpush1.bf16.msra.mxu0 %v387
        %409 = vmatprep.subr.bf16.mxu0 0
        %410 = vmatpush1.bf16.msra.mxu0 %v388
        %411 = vmatprep.subr.bf16.mxu0 0
        %412 = vmatpush1.bf16.msra.mxu0 %v389
        %413 = vmatprep.subr.bf16.mxu0 0
        %414 = vmatpush1.bf16.msra.mxu0 %v390
        %415 = vmatprep.subr.bf16.mxu0 0
        %416 = vmatpush1.bf16.msra.mxu0 0
        %417 = vmatprep.subr.bf16.mxu0 0
        %418 = vmatpush1.bf16.msra.mxu0 0
        %419 = vmatprep.subr.bf16.mxu0 0
        %420 = vmatpush1.bf16.msra.mxu0 0
        %421 = vmatprep.subr.bf16.mxu0 0
        %422 = vmatpush1.bf16.msra.mxu0 0
        %423 = vmatprep.subr.bf16.mxu0 0
        %424 = vmatpush1.bf16.msra.mxu0 0
        %425 = vmatprep.subr.bf16.mxu0 0
        %426 = vmatpush1.bf16.msra.mxu0 0
        %427 = vmatprep.subr.bf16.mxu0 0
        %428 = vmatpush1.bf16.msra.mxu0 0
        %429 = vmatprep.subr.bf16.mxu0 0
        %430 = vmatpush1.bf16.msra.mxu0 0
        %431 = vmatprep.mubr.bf16.mxu0 0
        %432 = vmatmul.mubr.bf16.gmra.mrb[0].mxu0 %v335
        %v433 = vpop.f32.mrb[0].mxu0
        %v434 = vadd.f32 0.0, %v433
        %v435 = vpop.f32.mrb[0].mxu0
        %v436 = vpop.f32.mrb[0].mxu0
        %v437 = vadd.f32 0.0, %v436
        %v438 = vpop.f32.mrb[0].mxu0
        %439 = vmatprep.mubr.bf16.mxu0 0
        %440 = vmatmul.mubr.bf16.gmra.mrb[0].mxu0 %v336
        %v441 = vpop.f32.mrb[0].mxu0
        %v442 = vadd.f32 0.0, %v441
        %v443 = vpop.f32.mrb[0].mxu0
        %v444 = vpop.f32.mrb[0].mxu0
        %v445 = vadd.f32 0.0, %v444
        %v446 = vpop.f32.mrb[0].mxu0
        %447 = vmatprep.mubr.bf16.mxu0 0
        %448 = vmatmul.mubr.bf16.gmra.mrb[0].mxu0 %v337
        %v449 = vpop.f32.mrb[0].mxu0
        %v450 = vadd.f32 0.0, %v449
        %v451 = vpop.f32.mrb[0].mxu0
        %v452 = vpop.f32.mrb[0].mxu0
        %v453 = vadd.f32 0.0, %v452
        %v454 = vpop.f32.mrb[0].mxu0
        %455 = vmatprep.mubr.bf16.mxu0 0
        %456 = vmatmul.mubr.bf16.gmra.mrb[0].mxu0 %v338
        %v457 = vpop.f32.mrb[0].mxu0
        %v458 = vadd.f32 0.0, %v457
        %v459 = vpop.f32.mrb[0].mxu0
        %v460 = vpop.f32.mrb[0].mxu0
        %v461 = vadd.f32 0.0, %v460
        %v462 = vpop.f32.mrb[0].mxu0
        %463 = vmatprep.mubr.bf16.mxu0 0
        %464 = vmatmul.mubr.bf16.gmra.mrb[0].mxu0 %v339
        %v465 = vpop.f32.mrb[0].mxu0
        %v466 = vadd.f32 0.0, %v465
        %v467 = vpop.f32.mrb[0].mxu0
        %v468 = vpop.f32.mrb[0].mxu0
        %v469 = vadd.f32 0.0, %v468
        %v470 = vpop.f32.mrb[0].mxu0
        %471 = vmatprep.mubr.bf16.mxu0 0
        %472 = vmatmul.mubr.bf16.gmra.mrb[0].mxu0 %v340
        %v473 = vpop.f32.mrb[0].mxu0
        %v474 = vadd.f32 0.0, %v473
        %v475 = vpop.f32.mrb[0].mxu0
        %v476 = vpop.f32.mrb[0].mxu0
        %v477 = vadd.f32 0.0, %v476
        %v478 = vpop.f32.mrb[0].mxu0
        %479 = vmatprep.mubr.bf16.mxu0 0
        %480 = vmatmul.mubr.bf16.gmra.mrb[0].mxu0 %v341
        %v481 = vpop.f32.mrb[0].mxu0
        %v482 = vadd.f32 0.0, %v481
        %v483 = vpop.f32.mrb[0].mxu0
        %v484 = vpop.f32.mrb[0].mxu0
        %v485 = vadd.f32 0.0, %v484
        %v486 = vpop.f32.mrb[0].mxu0
        %487 = vmatprep.mubr.bf16.mxu0 0
        %488 = vmatmul.mubr.bf16.gmra.mrb[0].mxu0 %v342
        %v489 = vpop.f32.mrb[0].mxu0
        %v490 = vadd.f32 0.0, %v489
        %v491 = vpop.f32.mrb[0].mxu0
        %v492 = vpop.f32.mrb[0].mxu0
        %v493 = vadd.f32 0.0, %v492
        %v494 = vpop.f32.mrb[0].mxu0
        %495 = vdwg.mxu0
        %v496 = vld [vmem:[%s227] sm:$0xf]
        %v497 = vld [vmem:[%s227 + $0x4] sm:$0xf]
        %v498 = vld [vmem:[%s227 + $0x8] sm:$0xf]
        %v499 = vld [vmem:[%s227 + $0xc] sm:$0xf]
        %v500 = vld [vmem:[%s227 + $0x10] sm:$0xf]
        %v501 = vld [vmem:[%s227 + $0x14] sm:$0xf]
        %v502 = vld [vmem:[%s227 + $0x18] sm:$0xf]
        %v503 = vld [vmem:[%s227 + $0x1c] sm:$0xf]
        %v504 = vld [vmem:[%s227 + $0x20] sm:$0xf]
        %v505 = vld [vmem:[%s227 + $0x24] sm:$0xf]
        %v506 = vld [vmem:[%s227 + $0x28] sm:$0xf]
        %v507 = vld [vmem:[%s227 + $0x2c] sm:$0xf]
        %v508 = vld [vmem:[%s227 + $0x30] sm:$0xf]
        %v509 = vld [vmem:[%s227 + $0x34] sm:$0xf]
        %v510 = vld [vmem:[%s227 + $0x38] sm:$0xf]
        %v511 = vld [vmem:[%s227 + $0x3c] sm:$0xf]
        %v512 = vpack.c.bf16 %v437, %v434
        %v513 = vpack.c.bf16 %v445, %v442
        %v514 = vpack.c.bf16 %v453, %v450
        %v515 = vpack.c.bf16 %v461, %v458
        %v516 = vpack.c.bf16 %v469, %v466
        %v517 = vpack.c.bf16 %v477, %v474
        %v518 = vpack.c.bf16 %v485, %v482
        %v519 = vpack.c.bf16 %v493, %v490
        %v520 = vld [vmem:[%s3] sm:$0x1]
        %v522 = vlaneseq
        %v523 = vshrl.u32 %v522, 7
        %v524 = vsub.s32 0, %v523
        %v525 = vrot.slane %v520, %v524
        %v543 = vunpack.c.l.b16 %v496
        %v544 = vunpack.c.l.b16 %v497
        %v545 = vunpack.c.l.b16 %v498
        %v546 = vunpack.c.l.b16 %v499
        %v547 = vunpack.c.l.b16 %v500
        %v548 = vunpack.c.l.b16 %v501
        %v549 = vunpack.c.l.b16 %v502
        %v550 = vunpack.c.l.b16 %v503
        %v551 = vunpack.c.l.b16 %v504
        %v552 = vunpack.c.l.b16 %v505
        %v553 = vunpack.c.l.b16 %v506
        %v554 = vunpack.c.l.b16 %v507
        %v555 = vunpack.c.l.b16 %v508
        %v556 = vunpack.c.l.b16 %v509
        %v557 = vunpack.c.l.b16 %v510
        %v558 = vunpack.c.l.b16 %v511
        %v559 = vpack.c.b16 %v544, %v543
        %v560 = vpack.c.b16 %v546, %v545
        %v561 = vpack.c.b16 %v548, %v547
        %v562 = vpack.c.b16 %v550, %v549
        %v563 = vpack.c.b16 %v552, %v551
        %v564 = vpack.c.b16 %v554, %v553
        %v565 = vpack.c.b16 %v556, %v555
        %v566 = vpack.c.b16 %v558, %v557
        %575 = vmatprep.subr.bf16.mxu0 0
        %576 = vmatpush1.bf16.msra.mxu0 %v512
        %577 = vmatprep.subr.bf16.mxu0 0
        %578 = vmatpush1.bf16.msra.mxu0 %v513
        %579 = vmatprep.subr.bf16.mxu0 0
        %580 = vmatpush1.bf16.msra.mxu0 %v514
        %581 = vmatprep.subr.bf16.mxu0 0
        %582 = vmatpush1.bf16.msra.mxu0 %v515
        %583 = vmatprep.subr.bf16.mxu0 0
        %584 = vmatpush1.bf16.msra.mxu0 %v516
        %585 = vmatprep.subr.bf16.mxu0 0
        %586 = vmatpush1.bf16.msra.mxu0 %v517
        %587 = vmatprep.subr.bf16.mxu0 0
        %588 = vmatpush1.bf16.msra.mxu0 %v518
        %589 = vmatprep.subr.bf16.mxu0 0
        %590 = vmatpush1.bf16.msra.mxu0 %v519
        %591 = vmatprep.subr.bf16.mxu0 0
        %592 = vmatpush1.bf16.msra.mxu0 0
        %593 = vmatprep.subr.bf16.mxu0 0
        %594 = vmatpush1.bf16.msra.mxu0 0
        %595 = vmatprep.subr.bf16.mxu0 0
        %596 = vmatpush1.bf16.msra.mxu0 0
        %597 = vmatprep.subr.bf16.mxu0 0
        %598 = vmatpush1.bf16.msra.mxu0 0
        %599 = vmatprep.subr.bf16.mxu0 0
        %600 = vmatpush1.bf16.msra.mxu0 0
        %601 = vmatprep.subr.bf16.mxu0 0
        %602 = vmatpush1.bf16.msra.mxu0 0
        %603 = vmatprep.subr.bf16.mxu0 0
        %604 = vmatpush1.bf16.msra.mxu0 0
        %605 = vmatprep.subr.bf16.mxu0 0
        %606 = vmatpush1.bf16.msra.mxu0 0
        %607 = vmatprep.mubr.bf16.mxu0 0
        %608 = vmatmul.mubr.bf16.gmra.mrb[0].mxu0 %v559
        %v609 = vpop.f32.mrb[0].mxu0
        %v610 = vadd.f32 %v525, %v609
        %v611 = vpop.f32.mrb[0].mxu0
        %v612 = vpop.f32.mrb[0].mxu0
        %v613 = vadd.f32 %v525, %v612
        %v614 = vpop.f32.mrb[0].mxu0
        %615 = vmatprep.mubr.bf16.mxu0 0
        %616 = vmatmul.mubr.bf16.gmra.mrb[0].mxu0 %v560
        %v617 = vpop.f32.mrb[0].mxu0
        %v618 = vadd.f32 %v525, %v617
        %v619 = vpop.f32.mrb[0].mxu0
        %v620 = vpop.f32.mrb[0].mxu0
        %v621 = vadd.f32 %v525, %v620
        %v622 = vpop.f32.mrb[0].mxu0
        %623 = vmatprep.mubr.bf16.mxu0 0
        %624 = vmatmul.mubr.bf16.gmra.mrb[0].mxu0 %v561
        %v625 = vpop.f32.mrb[0].mxu0
        %v626 = vadd.f32 %v525, %v625
        %v627 = vpop.f32.mrb[0].mxu0
        %v628 = vpop.f32.mrb[0].mxu0
        %v629 = vadd.f32 %v525, %v628
        %v630 = vpop.f32.mrb[0].mxu0
        %631 = vmatprep.mubr.bf16.mxu0 0
        %632 = vmatmul.mubr.bf16.gmra.mrb[0].mxu0 %v562
        %v633 = vpop.f32.mrb[0].mxu0
        %v634 = vadd.f32 %v525, %v633
        %v635 = vpop.f32.mrb[0].mxu0
        %v636 = vpop.f32.mrb[0].mxu0
        %v637 = vadd.f32 %v525, %v636
        %v638 = vpop.f32.mrb[0].mxu0
        %639 = vmatprep.mubr.bf16.mxu0 0
        %640 = vmatmul.mubr.bf16.gmra.mrb[0].mxu0 %v563
        %v641 = vpop.f32.mrb[0].mxu0
        %v642 = vadd.f32 %v525, %v641
        %v643 = vpop.f32.mrb[0].mxu0
        %v644 = vpop.f32.mrb[0].mxu0
        %v645 = vadd.f32 %v525, %v644
        %v646 = vpop.f32.mrb[0].mxu0
        %647 = vmatprep.mubr.bf16.mxu0 0
        %648 = vmatmul.mubr.bf16.gmra.mrb[0].mxu0 %v564
        %v649 = vpop.f32.mrb[0].mxu0
        %v650 = vadd.f32 %v525, %v649
        %v651 = vpop.f32.mrb[0].mxu0
        %v652 = vpop.f32.mrb[0].mxu0
        %v653 = vadd.f32 %v525, %v652
        %v654 = vpop.f32.mrb[0].mxu0
        %655 = vmatprep.mubr.bf16.mxu0 0
        %656 = vmatmul.mubr.bf16.gmra.mrb[0].mxu0 %v565
        %v657 = vpop.f32.mrb[0].mxu0
        %v658 = vadd.f32 %v525, %v657
        %v659 = vpop.f32.mrb[0].mxu0
        %v660 = vpop.f32.mrb[0].mxu0
        %v661 = vadd.f32 %v525, %v660
        %v662 = vpop.f32.mrb[0].mxu0
        %663 = vmatprep.mubr.bf16.mxu0 0
        %664 = vmatmul.mubr.bf16.gmra.mrb[0].mxu0 %v566
        %v665 = vpop.f32.mrb[0].mxu0
        %v666 = vadd.f32 %v525, %v665
        %v667 = vpop.f32.mrb[0].mxu0
        %v668 = vpop.f32.mrb[0].mxu0
        %v669 = vadd.f32 %v525, %v668
        %v670 = vpop.f32.mrb[0].mxu0
        %671 = vdwg.mxu0
        %v672 = vmax.f32 %v610, 0.0
        %v673 = vmax.f32 %v613, 0.0
        %v674 = vmax.f32 %v618, 0.0
        %v675 = vmax.f32 %v621, 0.0
        %v676 = vmax.f32 %v626, 0.0
        %v677 = vmax.f32 %v629, 0.0
        %v678 = vmax.f32 %v634, 0.0
        %v679 = vmax.f32 %v637, 0.0
        %v680 = vmax.f32 %v642, 0.0
        %v681 = vmax.f32 %v645, 0.0
        %v682 = vmax.f32 %v650, 0.0
        %v683 = vmax.f32 %v653, 0.0
        %v684 = vmax.f32 %v658, 0.0
        %v685 = vmax.f32 %v661, 0.0
        %v686 = vmax.f32 %v666, 0.0
        %v687 = vmax.f32 %v669, 0.0
        %v688 = vpack.c.bf16 %v673, %v672
        %v689 = vpack.c.bf16 %v675, %v674
        %v690 = vpack.c.bf16 %v677, %v676
        %v691 = vpack.c.bf16 %v679, %v678
        %v692 = vpack.c.bf16 %v681, %v680
        %v693 = vpack.c.bf16 %v683, %v682
        %v694 = vpack.c.bf16 %v685, %v684
        %v695 = vpack.c.bf16 %v687, %v686
        %s696 = scalar_lea.vmem [#allocation7], 64
        %v697 = vld [vmem:[%s696] sm:$0xf]
        %v698 = vld [vmem:[%s696 + $0x4] sm:$0xf]
        %v699 = vld [vmem:[%s696 + $0x8] sm:$0xf]
        %v700 = vld [vmem:[%s696 + $0xc] sm:$0xf]
        %v701 = vld [vmem:[%s696 + $0x10] sm:$0xf]
        %v702 = vld [vmem:[%s696 + $0x14] sm:$0xf]
        %v703 = vld [vmem:[%s696 + $0x18] sm:$0xf]
        %v704 = vld [vmem:[%s696 + $0x1c] sm:$0xf]
        %v705 = vld [vmem:[%s696 + $0x20] sm:$0xf]
        %v706 = vld [vmem:[%s696 + $0x24] sm:$0xf]
        %v707 = vld [vmem:[%s696 + $0x28] sm:$0xf]
        %v708 = vld [vmem:[%s696 + $0x2c] sm:$0xf]
        %v709 = vld [vmem:[%s696 + $0x30] sm:$0xf]
        %v710 = vld [vmem:[%s696 + $0x34] sm:$0xf]
        %v711 = vld [vmem:[%s696 + $0x38] sm:$0xf]
        %v712 = vld [vmem:[%s696 + $0x3c] sm:$0xf]
        %v729 = vunpack.c.l.b16 %v697
        %v730 = vunpack.c.l.b16 %v698
        %v731 = vunpack.c.l.b16 %v699
        %v732 = vunpack.c.l.b16 %v700
        %v733 = vunpack.c.l.b16 %v701
        %v734 = vunpack.c.l.b16 %v702
        %v735 = vunpack.c.l.b16 %v703
        %v736 = vunpack.c.l.b16 %v704
        %v737 = vunpack.c.l.b16 %v705
        %v738 = vunpack.c.l.b16 %v706
        %v739 = vunpack.c.l.b16 %v707
        %v740 = vunpack.c.l.b16 %v708
        %v741 = vunpack.c.l.b16 %v709
        %v742 = vunpack.c.l.b16 %v710
        %v743 = vunpack.c.l.b16 %v711
        %v744 = vunpack.c.l.b16 %v712
        %v745 = vpack.c.b16 %v730, %v729
        %v746 = vpack.c.b16 %v732, %v731
        %v747 = vpack.c.b16 %v734, %v733
        %v748 = vpack.c.b16 %v736, %v735
        %v749 = vpack.c.b16 %v738, %v737
        %v750 = vpack.c.b16 %v740, %v739
        %v751 = vpack.c.b16 %v742, %v741
        %v752 = vpack.c.b16 %v744, %v743
        %761 = vmatprep.subr.bf16.mxu0 0
        %762 = vmatpush1.bf16.msra.mxu0 %v745
        %763 = vmatprep.subr.bf16.mxu0 0
        %764 = vmatpush1.bf16.msra.mxu0 %v746
        %765 = vmatprep.subr.bf16.mxu0 0
        %766 = vmatpush1.bf16.msra.mxu0 %v747
        %767 = vmatprep.subr.bf16.mxu0 0
        %768 = vmatpush1.bf16.msra.mxu0 %v748
        %769 = vmatprep.subr.bf16.mxu0 0
        %770 = vmatpush1.bf16.msra.mxu0 %v749
        %771 = vmatprep.subr.bf16.mxu0 0
        %772 = vmatpush1.bf16.msra.mxu0 %v750
        %773 = vmatprep.subr.bf16.mxu0 0
        %774 = vmatpush1.bf16.msra.mxu0 %v751
        %775 = vmatprep.subr.bf16.mxu0 0
        %776 = vmatpush1.bf16.msra.mxu0 %v752
        %777 = vmatprep.subr.bf16.mxu0 0
        %778 = vmatpush1.bf16.msra.mxu0 0
        %779 = vmatprep.subr.bf16.mxu0 0
        %780 = vmatpush1.bf16.msra.mxu0 0
        %781 = vmatprep.subr.bf16.mxu0 0
        %782 = vmatpush1.bf16.msra.mxu0 0
        %783 = vmatprep.subr.bf16.mxu0 0
        %784 = vmatpush1.bf16.msra.mxu0 0
        %785 = vmatprep.subr.bf16.mxu0 0
        %786 = vmatpush1.bf16.msra.mxu0 0
        %787 = vmatprep.subr.bf16.mxu0 0
        %788 = vmatpush1.bf16.msra.mxu0 0
        %789 = vmatprep.subr.bf16.mxu0 0
        %790 = vmatpush1.bf16.msra.mxu0 0
        %791 = vmatprep.subr.bf16.mxu0 0
        %792 = vmatpush1.bf16.msra.mxu0 0
        %793 = vmatprep.mubr.bf16.mxu0 0
        %794 = vmatmul.mubr.bf16.gmra.mrb[0].mxu0 %v688
        %v795 = vpop.f32.mrb[0].mxu0
        %v796 = vadd.f32 0.0, %v795
        %v797 = vpop.f32.mrb[0].mxu0
        %v798 = vpop.f32.mrb[0].mxu0
        %v799 = vadd.f32 0.0, %v798
        %v800 = vpop.f32.mrb[0].mxu0
        %801 = vmatprep.mubr.bf16.mxu0 0
        %802 = vmatmul.mubr.bf16.gmra.mrb[0].mxu0 %v689
        %v803 = vpop.f32.mrb[0].mxu0
        %v804 = vadd.f32 0.0, %v803
        %v805 = vpop.f32.mrb[0].mxu0
        %v806 = vpop.f32.mrb[0].mxu0
        %v807 = vadd.f32 0.0, %v806
        %v808 = vpop.f32.mrb[0].mxu0
        %809 = vmatprep.mubr.bf16.mxu0 0
        %810 = vmatmul.mubr.bf16.gmra.mrb[0].mxu0 %v690
        %v811 = vpop.f32.mrb[0].mxu0
        %v812 = vadd.f32 0.0, %v811
        %v813 = vpop.f32.mrb[0].mxu0
        %v814 = vpop.f32.mrb[0].mxu0
        %v815 = vadd.f32 0.0, %v814
        %v816 = vpop.f32.mrb[0].mxu0
        %817 = vmatprep.mubr.bf16.mxu0 0
        %818 = vmatmul.mubr.bf16.gmra.mrb[0].mxu0 %v691
        %v819 = vpop.f32.mrb[0].mxu0
        %v820 = vadd.f32 0.0, %v819
        %v821 = vpop.f32.mrb[0].mxu0
        %v822 = vpop.f32.mrb[0].mxu0
        %v823 = vadd.f32 0.0, %v822
        %v824 = vpop.f32.mrb[0].mxu0
        %825 = vmatprep.mubr.bf16.mxu0 0
        %826 = vmatmul.mubr.bf16.gmra.mrb[0].mxu0 %v692
        %v827 = vpop.f32.mrb[0].mxu0
        %v828 = vadd.f32 0.0, %v827
        %v829 = vpop.f32.mrb[0].mxu0
        %v830 = vpop.f32.mrb[0].mxu0
        %v831 = vadd.f32 0.0, %v830
        %v832 = vpop.f32.mrb[0].mxu0
        %833 = vmatprep.mubr.bf16.mxu0 0
        %834 = vmatmul.mubr.bf16.gmra.mrb[0].mxu0 %v693
        %v835 = vpop.f32.mrb[0].mxu0
        %v836 = vadd.f32 0.0, %v835
        %v837 = vpop.f32.mrb[0].mxu0
        %v838 = vpop.f32.mrb[0].mxu0
        %v839 = vadd.f32 0.0, %v838
        %v840 = vpop.f32.mrb[0].mxu0
        %841 = vmatprep.mubr.bf16.mxu0 0
        %842 = vmatmul.mubr.bf16.gmra.mrb[0].mxu0 %v694
        %v843 = vpop.f32.mrb[0].mxu0
        %v844 = vadd.f32 0.0, %v843
        %v845 = vpop.f32.mrb[0].mxu0
        %v846 = vpop.f32.mrb[0].mxu0
        %v847 = vadd.f32 0.0, %v846
        %v848 = vpop.f32.mrb[0].mxu0
        %849 = vmatprep.mubr.bf16.mxu0 0
        %850 = vmatmul.mubr.bf16.gmra.mrb[0].mxu0 %v695
        %v851 = vpop.f32.mrb[0].mxu0
        %v852 = vadd.f32 0.0, %v851
        %v853 = vpop.f32.mrb[0].mxu0
        %v854 = vpop.f32.mrb[0].mxu0
        %v855 = vadd.f32 0.0, %v854
        %v856 = vpop.f32.mrb[0].mxu0
        %857 = vdwg.mxu0
        %v858 = vpack.c.bf16 %v799, %v796
        %v859 = vpack.c.bf16 %v807, %v804
        %v860 = vpack.c.bf16 %v815, %v812
        %v861 = vpack.c.bf16 %v823, %v820
        %v862 = vpack.c.bf16 %v831, %v828
        %v863 = vpack.c.bf16 %v839, %v836
        %v864 = vpack.c.bf16 %v847, %v844
        %v865 = vpack.c.bf16 %v855, %v852
        %s866 = scalar_lea.vmem %s3, 1
        %v867 = vld [vmem:[%s866] sm:$0x1]
        %v869 = vlaneseq
        %v870 = vshrl.u32 %v869, 7
        %v871 = vsub.s32 0, %v870
        %v872 = vrot.slane %v867, %v871
        %874 = vmatprep.subr.bf16.mxu0 0
        %875 = vmatpush1.bf16.msra.mxu0 %v858
        %876 = vmatprep.subr.bf16.mxu0 0
        %877 = vmatpush1.bf16.msra.mxu0 %v859
        %878 = vmatprep.subr.bf16.mxu0 0
        %879 = vmatpush1.bf16.msra.mxu0 %v860
        %880 = vmatprep.subr.bf16.mxu0 0
        %881 = vmatpush1.bf16.msra.mxu0 %v861
        %882 = vmatprep.subr.bf16.mxu0 0
        %883 = vmatpush1.bf16.msra.mxu0 %v862
        %884 = vmatprep.subr.bf16.mxu0 0
        %885 = vmatpush1.bf16.msra.mxu0 %v863
        %886 = vmatprep.subr.bf16.mxu0 0
        %887 = vmatpush1.bf16.msra.mxu0 %v864
        %888 = vmatprep.subr.bf16.mxu0 0
        %889 = vmatpush1.bf16.msra.mxu0 %v865
        %890 = vmatprep.subr.bf16.mxu0 0
        %891 = vmatpush1.bf16.msra.mxu0 0
        %892 = vmatprep.subr.bf16.mxu0 0
        %893 = vmatpush1.bf16.msra.mxu0 0
        %894 = vmatprep.subr.bf16.mxu0 0
        %895 = vmatpush1.bf16.msra.mxu0 0
        %896 = vmatprep.subr.bf16.mxu0 0
        %897 = vmatpush1.bf16.msra.mxu0 0
        %898 = vmatprep.subr.bf16.mxu0 0
        %899 = vmatpush1.bf16.msra.mxu0 0
        %900 = vmatprep.subr.bf16.mxu0 0
        %901 = vmatpush1.bf16.msra.mxu0 0
        %902 = vmatprep.subr.bf16.mxu0 0
        %903 = vmatpush1.bf16.msra.mxu0 0
        %904 = vmatprep.subr.bf16.mxu0 0
        %905 = vmatpush1.bf16.msra.mxu0 0
        %906 = vmatprep.mubr.bf16.mxu0 0
        %907 = vmatmul.mubr.bf16.gmra.mrb[0].mxu0 %v559
        %v908 = vpop.f32.mrb[0].mxu0
        %v909 = vadd.f32 %v872, %v908
        %v910 = vpop.f32.mrb[0].mxu0
        %v911 = vpop.f32.mrb[0].mxu0
        %v912 = vadd.f32 %v872, %v911
        %v913 = vpop.f32.mrb[0].mxu0
        %914 = vmatprep.mubr.bf16.mxu0 0
        %915 = vmatmul.mubr.bf16.gmra.mrb[0].mxu0 %v560
        %v916 = vpop.f32.mrb[0].mxu0
        %v917 = vadd.f32 %v872, %v916
        %v918 = vpop.f32.mrb[0].mxu0
        %v919 = vpop.f32.mrb[0].mxu0
        %v920 = vadd.f32 %v872, %v919
        %v921 = vpop.f32.mrb[0].mxu0
        %922 = vmatprep.mubr.bf16.mxu0 0
        %923 = vmatmul.mubr.bf16.gmra.mrb[0].mxu0 %v561
        %v924 = vpop.f32.mrb[0].mxu0
        %v925 = vadd.f32 %v872, %v924
        %v926 = vpop.f32.mrb[0].mxu0
        %v927 = vpop.f32.mrb[0].mxu0
        %v928 = vadd.f32 %v872, %v927
        %v929 = vpop.f32.mrb[0].mxu0
        %930 = vmatprep.mubr.bf16.mxu0 0
        %931 = vmatmul.mubr.bf16.gmra.mrb[0].mxu0 %v562
        %v932 = vpop.f32.mrb[0].mxu0
        %v933 = vadd.f32 %v872, %v932
        %v934 = vpop.f32.mrb[0].mxu0
        %v935 = vpop.f32.mrb[0].mxu0
        %v936 = vadd.f32 %v872, %v935
        %v937 = vpop.f32.mrb[0].mxu0
        %938 = vmatprep.mubr.bf16.mxu0 0
        %939 = vmatmul.mubr.bf16.gmra.mrb[0].mxu0 %v563
        %v940 = vpop.f32.mrb[0].mxu0
        %v941 = vadd.f32 %v872, %v940
        %v942 = vpop.f32.mrb[0].mxu0
        %v943 = vpop.f32.mrb[0].mxu0
        %v944 = vadd.f32 %v872, %v943
        %v945 = vpop.f32.mrb[0].mxu0
        %946 = vmatprep.mubr.bf16.mxu0 0
        %947 = vmatmul.mubr.bf16.gmra.mrb[0].mxu0 %v564
        %v948 = vpop.f32.mrb[0].mxu0
        %v949 = vadd.f32 %v872, %v948
        %v950 = vpop.f32.mrb[0].mxu0
        %v951 = vpop.f32.mrb[0].mxu0
        %v952 = vadd.f32 %v872, %v951
        %v953 = vpop.f32.mrb[0].mxu0
        %954 = vmatprep.mubr.bf16.mxu0 0
        %955 = vmatmul.mubr.bf16.gmra.mrb[0].mxu0 %v565
        %v956 = vpop.f32.mrb[0].mxu0
        %v957 = vadd.f32 %v872, %v956
        %v958 = vpop.f32.mrb[0].mxu0
        %v959 = vpop.f32.mrb[0].mxu0
        %v960 = vadd.f32 %v872, %v959
        %v961 = vpop.f32.mrb[0].mxu0
        %962 = vmatprep.mubr.bf16.mxu0 0
        %963 = vmatmul.mubr.bf16.gmra.mrb[0].mxu0 %v566
        %v964 = vpop.f32.mrb[0].mxu0
        %v965 = vadd.f32 %v872, %v964
        %v966 = vpop.f32.mrb[0].mxu0
        %v967 = vpop.f32.mrb[0].mxu0
        %v968 = vadd.f32 %v872, %v967
        %v969 = vpop.f32.mrb[0].mxu0
        %970 = vdwg.mxu0
        %v971 = vmax.f32 %v909, 0.0
        %v972 = vmax.f32 %v912, 0.0
        %v973 = vmax.f32 %v917, 0.0
        %v974 = vmax.f32 %v920, 0.0
        %v975 = vmax.f32 %v925, 0.0
        %v976 = vmax.f32 %v928, 0.0
        %v977 = vmax.f32 %v933, 0.0
        %v978 = vmax.f32 %v936, 0.0
        %v979 = vmax.f32 %v941, 0.0
        %v980 = vmax.f32 %v944, 0.0
        %v981 = vmax.f32 %v949, 0.0
        %v982 = vmax.f32 %v952, 0.0
        %v983 = vmax.f32 %v957, 0.0
        %v984 = vmax.f32 %v960, 0.0
        %v985 = vmax.f32 %v965, 0.0
        %v986 = vmax.f32 %v968, 0.0
        %v987 = vpack.c.bf16 %v972, %v971
        %v988 = vpack.c.bf16 %v974, %v973
        %v989 = vpack.c.bf16 %v976, %v975
        %v990 = vpack.c.bf16 %v978, %v977
        %v991 = vpack.c.bf16 %v980, %v979
        %v992 = vpack.c.bf16 %v982, %v981
        %v993 = vpack.c.bf16 %v984, %v983
        %v994 = vpack.c.bf16 %v986, %v985
        %s995 = scalar_lea.vmem [#allocation7], 128
        %v996 = vld [vmem:[%s995] sm:$0xf]
        %v997 = vld [vmem:[%s995 + $0x4] sm:$0xf]
        %v998 = vld [vmem:[%s995 + $0x8] sm:$0xf]
        %v999 = vld [vmem:[%s995 + $0xc] sm:$0xf]
        %v1000 = vld [vmem:[%s995 + $0x10] sm:$0xf]
        %v1001 = vld [vmem:[%s995 + $0x14] sm:$0xf]
        %v1002 = vld [vmem:[%s995 + $0x18] sm:$0xf]
        %v1003 = vld [vmem:[%s995 + $0x1c] sm:$0xf]
        %v1004 = vld [vmem:[%s995 + $0x20] sm:$0xf]
        %v1005 = vld [vmem:[%s995 + $0x24] sm:$0xf]
        %v1006 = vld [vmem:[%s995 + $0x28] sm:$0xf]
        %v1007 = vld [vmem:[%s995 + $0x2c] sm:$0xf]
        %v1008 = vld [vmem:[%s995 + $0x30] sm:$0xf]
        %v1009 = vld [vmem:[%s995 + $0x34] sm:$0xf]
        %v1010 = vld [vmem:[%s995 + $0x38] sm:$0xf]
        %v1011 = vld [vmem:[%s995 + $0x3c] sm:$0xf]
        %v1028 = vunpack.c.l.b16 %v996
        %v1029 = vunpack.c.l.b16 %v997
        %v1030 = vunpack.c.l.b16 %v998
        %v1031 = vunpack.c.l.b16 %v999
        %v1032 = vunpack.c.l.b16 %v1000
        %v1033 = vunpack.c.l.b16 %v1001
        %v1034 = vunpack.c.l.b16 %v1002
        %v1035 = vunpack.c.l.b16 %v1003
        %v1036 = vunpack.c.l.b16 %v1004
        %v1037 = vunpack.c.l.b16 %v1005
        %v1038 = vunpack.c.l.b16 %v1006
        %v1039 = vunpack.c.l.b16 %v1007
        %v1040 = vunpack.c.l.b16 %v1008
        %v1041 = vunpack.c.l.b16 %v1009
        %v1042 = vunpack.c.l.b16 %v1010
        %v1043 = vunpack.c.l.b16 %v1011
        %v1044 = vpack.c.b16 %v1029, %v1028
        %v1045 = vpack.c.b16 %v1031, %v1030
        %v1046 = vpack.c.b16 %v1033, %v1032
        %v1047 = vpack.c.b16 %v1035, %v1034
        %v1048 = vpack.c.b16 %v1037, %v1036
        %v1049 = vpack.c.b16 %v1039, %v1038
        %v1050 = vpack.c.b16 %v1041, %v1040
        %v1051 = vpack.c.b16 %v1043, %v1042
        %1060 = vmatprep.subr.bf16.mxu0 0
        %1061 = vmatpush1.bf16.msra.mxu0 %v1044
        %1062 = vmatprep.subr.bf16.mxu0 0
        %1063 = vmatpush1.bf16.msra.mxu0 %v1045
        %1064 = vmatprep.subr.bf16.mxu0 0
        %1065 = vmatpush1.bf16.msra.mxu0 %v1046
        %1066 = vmatprep.subr.bf16.mxu0 0
        %1067 = vmatpush1.bf16.msra.mxu0 %v1047
        %1068 = vmatprep.subr.bf16.mxu0 0
        %1069 = vmatpush1.bf16.msra.mxu0 %v1048
        %1070 = vmatprep.subr.bf16.mxu0 0
        %1071 = vmatpush1.bf16.msra.mxu0 %v1049
        %1072 = vmatprep.subr.bf16.mxu0 0
        %1073 = vmatpush1.bf16.msra.mxu0 %v1050
        %1074 = vmatprep.subr.bf16.mxu0 0
        %1075 = vmatpush1.bf16.msra.mxu0 %v1051
        %1076 = vmatprep.subr.bf16.mxu0 0
        %1077 = vmatpush1.bf16.msra.mxu0 0
        %1078 = vmatprep.subr.bf16.mxu0 0
        %1079 = vmatpush1.bf16.msra.mxu0 0
        %1080 = vmatprep.subr.bf16.mxu0 0
        %1081 = vmatpush1.bf16.msra.mxu0 0
        %1082 = vmatprep.subr.bf16.mxu0 0
        %1083 = vmatpush1.bf16.msra.mxu0 0
        %1084 = vmatprep.subr.bf16.mxu0 0
        %1085 = vmatpush1.bf16.msra.mxu0 0
        %1086 = vmatprep.subr.bf16.mxu0 0
        %1087 = vmatpush1.bf16.msra.mxu0 0
        %1088 = vmatprep.subr.bf16.mxu0 0
        %1089 = vmatpush1.bf16.msra.mxu0 0
        %1090 = vmatprep.subr.bf16.mxu0 0
        %1091 = vmatpush1.bf16.msra.mxu0 0
        %1092 = vmatprep.mubr.bf16.mxu0 0
        %1093 = vmatmul.mubr.bf16.gmra.mrb[0].mxu0 %v987
        %v1094 = vpop.f32.mrb[0].mxu0
        %v1095 = vadd.f32 0.0, %v1094
        %v1096 = vpop.f32.mrb[0].mxu0
        %v1097 = vpop.f32.mrb[0].mxu0
        %v1098 = vadd.f32 0.0, %v1097
        %v1099 = vpop.f32.mrb[0].mxu0
        %1100 = vmatprep.mubr.bf16.mxu0 0
        %1101 = vmatmul.mubr.bf16.gmra.mrb[0].mxu0 %v988
        %v1102 = vpop.f32.mrb[0].mxu0
        %v1103 = vadd.f32 0.0, %v1102
        %v1104 = vpop.f32.mrb[0].mxu0
        %v1105 = vpop.f32.mrb[0].mxu0
        %v1106 = vadd.f32 0.0, %v1105
        %v1107 = vpop.f32.mrb[0].mxu0
        %1108 = vmatprep.mubr.bf16.mxu0 0
        %1109 = vmatmul.mubr.bf16.gmra.mrb[0].mxu0 %v989
        %v1110 = vpop.f32.mrb[0].mxu0
        %v1111 = vadd.f32 0.0, %v1110
        %v1112 = vpop.f32.mrb[0].mxu0
        %v1113 = vpop.f32.mrb[0].mxu0
        %v1114 = vadd.f32 0.0, %v1113
        %v1115 = vpop.f32.mrb[0].mxu0
        %1116 = vmatprep.mubr.bf16.mxu0 0
        %1117 = vmatmul.mubr.bf16.gmra.mrb[0].mxu0 %v990
        %v1118 = vpop.f32.mrb[0].mxu0
        %v1119 = vadd.f32 0.0, %v1118
        %v1120 = vpop.f32.mrb[0].mxu0
        %v1121 = vpop.f32.mrb[0].mxu0
        %v1122 = vadd.f32 0.0, %v1121
        %v1123 = vpop.f32.mrb[0].mxu0
        %1124 = vmatprep.mubr.bf16.mxu0 0
        %1125 = vmatmul.mubr.bf16.gmra.mrb[0].mxu0 %v991
        %v1126 = vpop.f32.mrb[0].mxu0
        %v1127 = vadd.f32 0.0, %v1126
        %v1128 = vpop.f32.mrb[0].mxu0
        %v1129 = vpop.f32.mrb[0].mxu0
        %v1130 = vadd.f32 0.0, %v1129
        %v1131 = vpop.f32.mrb[0].mxu0
        %1132 = vmatprep.mubr.bf16.mxu0 0
        %1133 = vmatmul.mubr.bf16.gmra.mrb[0].mxu0 %v992
        %v1134 = vpop.f32.mrb[0].mxu0
        %v1135 = vadd.f32 0.0, %v1134
        %v1136 = vpop.f32.mrb[0].mxu0
        %v1137 = vpop.f32.mrb[0].mxu0
        %v1138 = vadd.f32 0.0, %v1137
        %v1139 = vpop.f32.mrb[0].mxu0
        %1140 = vmatprep.mubr.bf16.mxu0 0
        %1141 = vmatmul.mubr.bf16.gmra.mrb[0].mxu0 %v993
        %v1142 = vpop.f32.mrb[0].mxu0
        %v1143 = vadd.f32 0.0, %v1142
        %v1144 = vpop.f32.mrb[0].mxu0
        %v1145 = vpop.f32.mrb[0].mxu0
        %v1146 = vadd.f32 0.0, %v1145
        %v1147 = vpop.f32.mrb[0].mxu0
        %1148 = vmatprep.mubr.bf16.mxu0 0
        %1149 = vmatmul.mubr.bf16.gmra.mrb[0].mxu0 %v994
        %v1150 = vpop.f32.mrb[0].mxu0
        %v1151 = vadd.f32 0.0, %v1150
        %v1152 = vpop.f32.mrb[0].mxu0
        %v1153 = vpop.f32.mrb[0].mxu0
        %v1154 = vadd.f32 0.0, %v1153
        %v1155 = vpop.f32.mrb[0].mxu0
        %1156 = vdwg.mxu0
        %v1157 = vpack.c.bf16 %v1098, %v1095
        %v1158 = vpack.c.bf16 %v1106, %v1103
        %v1159 = vpack.c.bf16 %v1114, %v1111
        %v1160 = vpack.c.bf16 %v1122, %v1119
        %v1161 = vpack.c.bf16 %v1130, %v1127
        %v1162 = vpack.c.bf16 %v1138, %v1135
        %v1163 = vpack.c.bf16 %v1146, %v1143
        %v1164 = vpack.c.bf16 %v1154, %v1151
        %s1165 = scalar_lea.vmem %s3, 2
        %v1166 = vld [vmem:[%s1165] sm:$0x1]
        %v1168 = vlaneseq
        %v1169 = vshrl.u32 %v1168, 7
        %v1170 = vsub.s32 0, %v1169
        %v1171 = vrot.slane %v1166, %v1170
        %1173 = vmatprep.subr.bf16.mxu0 0
        %1174 = vmatpush1.bf16.msra.mxu0 %v1157
        %1175 = vmatprep.subr.bf16.mxu0 0
        %1176 = vmatpush1.bf16.msra.mxu0 %v1158
        %1177 = vmatprep.subr.bf16.mxu0 0
        %1178 = vmatpush1.bf16.msra.mxu0 %v1159
        %1179 = vmatprep.subr.bf16.mxu0 0
        %1180 = vmatpush1.bf16.msra.mxu0 %v1160
        %1181 = vmatprep.subr.bf16.mxu0 0
        %1182 = vmatpush1.bf16.msra.mxu0 %v1161
        %1183 = vmatprep.subr.bf16.mxu0 0
        %1184 = vmatpush1.bf16.msra.mxu0 %v1162
        %1185 = vmatprep.subr.bf16.mxu0 0
        %1186 = vmatpush1.bf16.msra.mxu0 %v1163
        %1187 = vmatprep.subr.bf16.mxu0 0
        %1188 = vmatpush1.bf16.msra.mxu0 %v1164
        %1189 = vmatprep.subr.bf16.mxu0 0
        %1190 = vmatpush1.bf16.msra.mxu0 0
        %1191 = vmatprep.subr.bf16.mxu0 0
        %1192 = vmatpush1.bf16.msra.mxu0 0
        %1193 = vmatprep.subr.bf16.mxu0 0
        %1194 = vmatpush1.bf16.msra.mxu0 0
        %1195 = vmatprep.subr.bf16.mxu0 0
        %1196 = vmatpush1.bf16.msra.mxu0 0
        %1197 = vmatprep.subr.bf16.mxu0 0
        %1198 = vmatpush1.bf16.msra.mxu0 0
        %1199 = vmatprep.subr.bf16.mxu0 0
        %1200 = vmatpush1.bf16.msra.mxu0 0
        %1201 = vmatprep.subr.bf16.mxu0 0
        %1202 = vmatpush1.bf16.msra.mxu0 0
        %1203 = vmatprep.subr.bf16.mxu0 0
        %1204 = vmatpush1.bf16.msra.mxu0 0
        %1205 = vmatprep.mubr.bf16.mxu0 0
        %1206 = vmatmul.mubr.bf16.gmra.mrb[0].mxu0 %v559
        %v1207 = vpop.f32.mrb[0].mxu0
        %v1208 = vadd.f32 %v1171, %v1207
        %v1209 = vpop.f32.mrb[0].mxu0
        %v1210 = vpop.f32.mrb[0].mxu0
        %v1211 = vadd.f32 %v1171, %v1210
        %v1212 = vpop.f32.mrb[0].mxu0
        %1213 = vmatprep.mubr.bf16.mxu0 0
        %1214 = vmatmul.mubr.bf16.gmra.mrb[0].mxu0 %v560
        %v1215 = vpop.f32.mrb[0].mxu0
        %v1216 = vadd.f32 %v1171, %v1215
        %v1217 = vpop.f32.mrb[0].mxu0
        %v1218 = vpop.f32.mrb[0].mxu0
        %v1219 = vadd.f32 %v1171, %v1218
        %v1220 = vpop.f32.mrb[0].mxu0
        %1221 = vmatprep.mubr.bf16.mxu0 0
        %1222 = vmatmul.mubr.bf16.gmra.mrb[0].mxu0 %v561
        %v1223 = vpop.f32.mrb[0].mxu0
        %v1224 = vadd.f32 %v1171, %v1223
        %v1225 = vpop.f32.mrb[0].mxu0
        %v1226 = vpop.f32.mrb[0].mxu0
        %v1227 = vadd.f32 %v1171, %v1226
        %v1228 = vpop.f32.mrb[0].mxu0
        %1229 = vmatprep.mubr.bf16.mxu0 0
        %1230 = vmatmul.mubr.bf16.gmra.mrb[0].mxu0 %v562
        %v1231 = vpop.f32.mrb[0].mxu0
        %v1232 = vadd.f32 %v1171, %v1231
        %v1233 = vpop.f32.mrb[0].mxu0
        %v1234 = vpop.f32.mrb[0].mxu0
        %v1235 = vadd.f32 %v1171, %v1234
        %v1236 = vpop.f32.mrb[0].mxu0
        %1237 = vmatprep.mubr.bf16.mxu0 0
        %1238 = vmatmul.mubr.bf16.gmra.mrb[0].mxu0 %v563
        %v1239 = vpop.f32.mrb[0].mxu0
        %v1240 = vadd.f32 %v1171, %v1239
        %v1241 = vpop.f32.mrb[0].mxu0
        %v1242 = vpop.f32.mrb[0].mxu0
        %v1243 = vadd.f32 %v1171, %v1242
        %v1244 = vpop.f32.mrb[0].mxu0
        %1245 = vmatprep.mubr.bf16.mxu0 0
        %1246 = vmatmul.mubr.bf16.gmra.mrb[0].mxu0 %v564
        %v1247 = vpop.f32.mrb[0].mxu0
        %v1248 = vadd.f32 %v1171, %v1247
        %v1249 = vpop.f32.mrb[0].mxu0
        %v1250 = vpop.f32.mrb[0].mxu0
        %v1251 = vadd.f32 %v1171, %v1250
        %v1252 = vpop.f32.mrb[0].mxu0
        %1253 = vmatprep.mubr.bf16.mxu0 0
        %1254 = vmatmul.mubr.bf16.gmra.mrb[0].mxu0 %v565
        %v1255 = vpop.f32.mrb[0].mxu0
        %v1256 = vadd.f32 %v1171, %v1255
        %v1257 = vpop.f32.mrb[0].mxu0
        %v1258 = vpop.f32.mrb[0].mxu0
        %v1259 = vadd.f32 %v1171, %v1258
        %v1260 = vpop.f32.mrb[0].mxu0
        %1261 = vmatprep.mubr.bf16.mxu0 0
        %1262 = vmatmul.mubr.bf16.gmra.mrb[0].mxu0 %v566
        %v1263 = vpop.f32.mrb[0].mxu0
        %v1264 = vadd.f32 %v1171, %v1263
        %v1265 = vpop.f32.mrb[0].mxu0
        %v1266 = vpop.f32.mrb[0].mxu0
        %v1267 = vadd.f32 %v1171, %v1266
        %v1268 = vpop.f32.mrb[0].mxu0
        %1269 = vdwg.mxu0
        %v1270 = vpack.c.bf16 %v1211, %v1208
        %v1271 = vpack.c.bf16 %v1219, %v1216
        %v1272 = vpack.c.bf16 %v1227, %v1224
        %v1273 = vpack.c.bf16 %v1235, %v1232
        %v1274 = vpack.c.bf16 %v1243, %v1240
        %v1275 = vpack.c.bf16 %v1251, %v1248
        %v1276 = vpack.c.bf16 %v1259, %v1256
        %v1277 = vpack.c.bf16 %v1267, %v1264
        %v1286 = vunpack.c.l.b16 %v1270
        %v1287 = vunpack.c.h.b16 %v1270
        %v1288 = vunpack.c.l.b16 %v1271
        %v1289 = vunpack.c.h.b16 %v1271
        %v1290 = vunpack.c.l.b16 %v1272
        %v1291 = vunpack.c.h.b16 %v1272
        %v1292 = vunpack.c.l.b16 %v1273
        %v1293 = vunpack.c.h.b16 %v1273
        %v1294 = vunpack.c.l.b16 %v1274
        %v1295 = vunpack.c.h.b16 %v1274
        %v1296 = vunpack.c.l.b16 %v1275
        %v1297 = vunpack.c.h.b16 %v1275
        %v1298 = vunpack.c.l.b16 %v1276
        %v1299 = vunpack.c.h.b16 %v1276
        %v1300 = vunpack.c.l.b16 %v1277
        %v1301 = vunpack.c.h.b16 %v1277
        %v1302 = vpack.c.b16 %v1286, %v1286
        %v1303 = vpack.c.b16 %v1287, %v1287
        %v1304 = vpack.c.b16 %v1288, %v1288
        %v1305 = vpack.c.b16 %v1289, %v1289
        %v1306 = vpack.c.b16 %v1290, %v1290
        %v1307 = vpack.c.b16 %v1291, %v1291
        %v1308 = vpack.c.b16 %v1292, %v1292
        %v1309 = vpack.c.b16 %v1293, %v1293
        %v1310 = vpack.c.b16 %v1294, %v1294
        %v1311 = vpack.c.b16 %v1295, %v1295
        %v1312 = vpack.c.b16 %v1296, %v1296
        %v1313 = vpack.c.b16 %v1297, %v1297
        %v1314 = vpack.c.b16 %v1298, %v1298
        %v1315 = vpack.c.b16 %v1299, %v1299
        %v1316 = vpack.c.b16 %v1300, %v1300
        %v1317 = vpack.c.b16 %v1301, %v1301
        %1334 = vst [vmem:[%s269] sm:$0xf] %v1302
        %1335 = vst [vmem:[%s269 + $0x4] sm:$0xf] %v1303
        %1336 = vst [vmem:[%s269 + $0x8] sm:$0xf] %v1304
        %1337 = vst [vmem:[%s269 + $0xc] sm:$0xf] %v1305
        %1338 = vst [vmem:[%s269 + $0x10] sm:$0xf] %v1306
        %1339 = vst [vmem:[%s269 + $0x14] sm:$0xf] %v1307
        %1340 = vst [vmem:[%s269 + $0x18] sm:$0xf] %v1308
        %1341 = vst [vmem:[%s269 + $0x1c] sm:$0xf] %v1309
        %1342 = vst [vmem:[%s269 + $0x20] sm:$0xf] %v1310
        %1343 = vst [vmem:[%s269 + $0x24] sm:$0xf] %v1311
        %1344 = vst [vmem:[%s269 + $0x28] sm:$0xf] %v1312
        %1345 = vst [vmem:[%s269 + $0x2c] sm:$0xf] %v1313
        %1346 = vst [vmem:[%s269 + $0x30] sm:$0xf] %v1314
        %1347 = vst [vmem:[%s269 + $0x34] sm:$0xf] %v1315
        %1348 = vst [vmem:[%s269 + $0x38] sm:$0xf] %v1316
        %1349 = vst [vmem:[%s269 + $0x3c] sm:$0xf] %v1317
        %s1350 = sand.u32 %s126, 1
        %s1351 = scalar_lea.sflag [#allocation4], %s1350
        %s1352 = sand.u32 %s126, 1
        %s1353 = smul.addr %s1352, 64
        %s1354 = scalar_lea.vmem [#allocation8], %s1353
        // Predicated region
        $region49: #{tpu_custom_call.1} parent=35 // pred_check
          %p1355 = pneg %p136
        $region50: #{tpu_custom_call.1} parent=35 // pred_check_branch
          %1357 = sbr.rel (%p1355) target = $region52
        $region51: #{tpu_custom_call.1} parent=35 // pred_region
          %s1359 = ssub.s32 1024, 1024
          %1360 = vsyncadd %s1351, %s1359
          %s1361 = smul.addr %s24, 16
          %s1362 = smul.addr %s1361, 64
          %s1363 = scalar_lea.hbm %s4, %s1362
          %s1364 = sshll.u32 %s1354, 4
          %s1365 = int_to_ptr.vmem [resolvable:$true] %s1364
          %1370 = dma.vmem_to_hbm [thread:$0]  %s1365, 1024, %s1363, %s1351, 64, 64, 4
        $region52: #{tpu_custom_call.1} parent=35 // pred_fallthru
          _
      $region36: #{tpu_custom_call.1} parent=5 // pred_fallthru
        _
      %p1371 = scmp.le.s32.totalorder 2, %s19
      // Predicated region
      $region53: #{tpu_custom_call.1} parent=5 // pred_check
        %p1372 = pneg %p1371
      $region54: #{tpu_custom_call.1} parent=5 // pred_check_branch
        %1374 = sbr.rel (%p1372) target = $region56
      $region55: #{tpu_custom_call.1} parent=5 // pred_region
        %s1375 = ssub.s32 %s19, 2
        // Predicated region
        $region57: #{tpu_custom_call.1} parent=55 // pred_check
          %p1376 = pneg %p142
        $region58: #{tpu_custom_call.1} parent=55 // pred_check_branch
          %1378 = sbr.rel (%p1376) target = $region60
        $region59: #{tpu_custom_call.1} parent=55 // pred_region
          %s1379 = sand.u32 %s127, 1
          %s1380 = scalar_lea.sflag [#allocation4], %s1379
          %s1381 = sand.u32 %s127, 1
          %s1382 = smul.addr %s1381, 64
          %s1383 = scalar_lea.vmem [#allocation8], %s1382
          %1384 = dma.done %s1380, 1024
        $region60: #{tpu_custom_call.1} parent=55 // pred_fallthru
          _
      $region56: #{tpu_custom_call.1} parent=5 // pred_fallthru
        _
    $region6: #{tpu_custom_call.1} parent=1 // loop_footer
      %s23 = sadd.s32 1, %s19
    $region7: #{tpu_custom_call.1} parent=1 // loop_footer_branch
      %18 = sbr.rel target = $region3
    $region8: #{tpu_custom_call.1} parent=1 // loop_exit
      _
    %1385 = vsyncpa [#allocation3], 1
    %s1386 = scalar_lea.sflag [#allocation3], 1
    %1387 = vsyncpa %s1386, 1
    %1388 = vsyncpa [#allocation6], 1
    %s1389 = scalar_lea.sflag [#allocation6], 1
    %1390 = vsyncpa %s1389, 1
    %1391 = vsyncpa [#allocation4], 1
    %s1392 = scalar_lea.sflag [#allocation4], 1
    %1393 = vsyncpa %s1392, 1

</llo_original>
